<compile_context>
chip_gen: v6e
topology: v6e:2x2x1
jax: 0.10.0
libtpu: 0.0.40
codegen_flags: <defaults>
</compile_context>

<pallas_src>
import jax
import jax.numpy as jnp
from jax.experimental import pallas as pl
from jax.experimental.pallas import tpu as pltpu

D_IN = 896        # in_proj input features
D_MID = 486       # adapter bottleneck (PyTorch)
D_MID_PAD = 512   # bottleneck zero-padded to 4*128 for clean lane/MXU tiling
D_OUT = 896       # out_proj output features
TM_MAX = 512      # rows per grid step (sweep 512..1024 on very large batches)


def _round_up(x, m):
    return (x + m - 1) // m * m


def adapter_kernel(x_ref, w1_ref, b1_ref, w2_ref, b2_ref, o_ref):
    # x_ref : (TM, 896)  f32      w1_ref: (896, 512) bf16    b1_ref: (1, 512) f32
    # w2_ref: (512, 896) bf16     b2_ref: (1, 896)   f32     o_ref : (TM, 896) out_dtype
    # Cast x to bf16 in-kernel (VPU) -- no wrapper-side pre-pass over x.
    x_bf = x_ref[...].astype(jnp.bfloat16)
    h = jnp.dot(x_bf, w1_ref[...],
                preferred_element_type=jnp.float32) + b1_ref[...]
    # core layer == identity (see TODO above).  The 26 zero-padded bottleneck
    # columns stay exactly zero and hit zero rows of W2, so the padding is
    # numerically transparent.
    # NOTE: h is cast to bf16 before the second matmul (MXU operand dtype);
    # flag if strict f32 parity with the PyTorch forward is required.
    out = jnp.dot(h.astype(jnp.bfloat16), w2_ref[...],
                  preferred_element_type=jnp.float32) + b2_ref[...]
    o_ref[...] = out.astype(o_ref.dtype)


def prepare_adapter_params(w1, b1, w2, b2):
    """One-time parameter prep (pad 486->512 + bf16 cast), hoisted out of the
    per-call path.

    w1: (896, 486), b1: (486,), w2: (486, 896), b2: (896,)
    (weights stored as (in_features, out_features) == PyTorch weight.T)
    """
    pad = D_MID_PAD - D_MID
    w1_bf = jnp.pad(w1, ((0, 0), (0, pad))).astype(jnp.bfloat16)
    b1_p = jnp.pad(b1.reshape(1, D_MID), ((0, 0), (0, pad))).astype(jnp.float32)
    w2_bf = jnp.pad(w2, ((0, pad), (0, 0))).astype(jnp.bfloat16)
    b2_p = b2.reshape(1, D_OUT).astype(jnp.float32)
    return w1_bf, b1_p, w2_bf, b2_p


def _pick_row_tile(n_rows, tm_max):
    # Tiny-batch path: round to 16 (bf16 sublane packing of the in-kernel cast).
    tm_small = _round_up(n_rows, 16)
    # Keep >= ~4 grid steps on medium/large batches (>= 2 per v7x TensorCore),
    # rounded to a 128 multiple for the MXU.
    tm_steps = _round_up(pl.cdiv(n_rows, 4), 128)
    return max(16, min(tm_max, tm_small, tm_steps))


def adapter_wrapped_layer(x, params, *, tm_max=TM_MAX, out_dtype=jnp.float32):
    """x: (B, S, 896) float32 -> (B, S, 896) out_dtype.

    params: output of prepare_adapter_params. out_dtype=jnp.bfloat16 halves the
    dominant HBM write stream when the consumer tolerates a bf16 result.
    """
    w1_bf, b1_p, w2_bf, b2_p = params
    B, S, _ = x.shape
    n_rows = B * S
    x2d = x.reshape(n_rows, D_IN)   # no pad copy, no cast: kernel reads f32

    tm = _pick_row_tile(n_rows, tm_max)
    grid = (pl.cdiv(n_rows, tm),)   # ragged last block handled by Pallas masking

    # VMEM budget derived from actual usage (double-buffered x/out, resident
    # weights x2 buffers, f32 intermediates), with 2x headroom for Mosaic
    # internal scratch; clamped to [16 MiB, 48 MiB].
    out_itemsize = jnp.dtype(out_dtype).itemsize
    vmem_bytes = (2 * tm * D_IN * 4
                  + 2 * tm * D_OUT * out_itemsize
                  + 2 * 2 * (D_IN * D_MID_PAD + D_MID_PAD * D_OUT)
                  + 2 * 4 * (D_MID_PAD + D_OUT)
                  + tm * (D_MID_PAD + D_OUT) * 4)
    vmem_limit = int(min(max(2 * vmem_bytes, 16 * 1024 * 1024),
                         48 * 1024 * 1024))

    out2d = pl.pallas_call(
        adapter_kernel,
        out_shape=jax.ShapeDtypeStruct((n_rows, D_OUT), out_dtype),
        grid_spec=pltpu.PrefetchScalarGridSpec(
            num_scalar_prefetch=0,
            grid=grid,
            in_specs=[
                pl.BlockSpec((tm, D_IN), lambda i: (i, 0)),           # x rows (f32)
                pl.BlockSpec((D_IN, D_MID_PAD), lambda i: (0, 0)),    # W1 (resident)
                pl.BlockSpec((1, D_MID_PAD), lambda i: (0, 0)),       # b1
                pl.BlockSpec((D_MID_PAD, D_OUT), lambda i: (0, 0)),   # W2 (resident)
                pl.BlockSpec((1, D_OUT), lambda i: (0, 0)),           # b2
            ],
            out_specs=pl.BlockSpec((tm, D_OUT), lambda i: (i, 0)),
        ),
        compiler_params=pltpu.CompilerParams(
            dimension_semantics=("parallel",),        # megacore / 2-TC sharding
            vmem_limit_bytes=vmem_limit),
    )(x2d, w1_bf, b1_p, w2_bf, b2_p)

    return out2d.reshape(B, S, D_OUT)


def _init_linear(key, fan_in, fan_out):
    # Deterministic stand-in for PyTorch's default Linear init:
    # U(-1/sqrt(fan_in), 1/sqrt(fan_in)) for both weight and bias.
    kw, kb = jax.random.split(key)
    bound = 1.0 / jnp.sqrt(fan_in)
    # stored as (in_features, out_features)  == PyTorch weight.T
    w = jax.random.uniform(kw, (fan_in, fan_out), jnp.float32, -bound, bound)
    b = jax.random.uniform(kb, (fan_out,), jnp.float32, -bound, bound)
    return w, b


def _ref_forward_f32(x, w1, b1, w2, b2):
    h = jnp.einsum("bsi,im->bsm", x, w1) + b1
    return jnp.einsum("bsm,mo->bso", h, w2) + b2


if __name__ == "__main__":
    key = jax.random.PRNGKey(0)
    kx, k1, k2, kx2 = jax.random.split(key, 4)

    w1, b1 = _init_linear(k1, D_IN, D_MID)    # in_proj
    w2, b2 = _init_linear(k2, D_MID, D_OUT)   # out_proj
    params = prepare_adapter_params(w1, b1, w2, b2)   # one-time prep

    # --- primary run: small, evenly-divisible shape, f32 output ---------------
    B, S = 2, 8
    x = jax.random.normal(kx, (B, S, D_IN), jnp.float32)
    out = jax.block_until_ready(adapter_wrapped_layer(x, params))
    assert out.shape == (B, S, D_OUT)
    assert out.dtype == jnp.float32

    # Reference 1: same bf16 operand casts as the kernel (tight tolerance).
    x2d = x.reshape(-1, D_IN)
    h_ref = jnp.dot(x2d.astype(jnp.bfloat16), w1.astype(jnp.bfloat16),
                    preferred_element_type=jnp.float32) + b1
    ref_bf = (jnp.dot(h_ref.astype(jnp.bfloat16), w2.astype(jnp.bfloat16),
                      preferred_element_type=jnp.float32) + b2).reshape(B, S, D_OUT)
    assert jnp.allclose(out, ref_bf, atol=2e-3, rtol=2e-3)

    # Reference 2: full f32 math (looser tolerance covers the bf16 operand cast).
    ref_f32 = _ref_forward_f32(x, w1, b1, w2, b2)
    assert jnp.allclose(out, ref_f32, atol=3e-2, rtol=3e-2)

    # --- ragged run: n_rows not a multiple of the tile (masked last block) ----
    Br, Sr = 3, 7   # 21 rows
    xr = jax.random.normal(kx2, (Br, Sr, D_IN), jnp.float32)
    out_r = jax.block_until_ready(adapter_wrapped_layer(xr, params))
    assert out_r.shape == (Br, Sr, D_OUT)
    ref_r = _ref_forward_f32(xr, w1, b1, w2, b2)
    assert jnp.allclose(out_r, ref_r, atol=3e-2, rtol=3e-2)

    # --- optional bf16-output path (halves the dominant HBM write stream) -----
    out_bf = jax.block_until_ready(
        adapter_wrapped_layer(x, params, out_dtype=jnp.bfloat16))
    assert out_bf.dtype == jnp.bfloat16
    assert jnp.allclose(out_bf.astype(jnp.float32), ref_f32, atol=5e-2, rtol=5e-2)

    print("KERNEL_OK")
</pallas_src>

<mosaic_0001>
module attributes {stable_mosaic.version = 11 : i64} {
  func.func @adapter_kernel(%arg0: i32, %arg1: memref<16x896xf32, #tpu.memory_space<vmem>>, %arg2: memref<896x512xbf16, #tpu.memory_space<vmem>>, %arg3: memref<1x512xf32, #tpu.memory_space<vmem>>, %arg4: memref<512x896xbf16, #tpu.memory_space<vmem>>, %arg5: memref<1x896xf32, #tpu.memory_space<vmem>>, %arg6: memref<16x896xf32, #tpu.memory_space<vmem>>) attributes {dimension_semantics = [#tpu.dimension_semantics<parallel>], iteration_bounds = array<i64: 1>, scalar_prefetch = 0 : i64, scratch_operands = 0 : i64, tpu.core_type = #tpu.core_type<tc>, window_params = [{transform_indices = @transform_0, window_bounds = array<i64: 16, 896>}, {pipeline_mode = #tpu.pipeline_mode<synchronous>, transform_indices = @transform_1, window_bounds = array<i64: 896, 512>}, {pipeline_mode = #tpu.pipeline_mode<synchronous>, transform_indices = @transform_2, window_bounds = array<i64: 1, 512>}, {pipeline_mode = #tpu.pipeline_mode<synchronous>, transform_indices = @transform_3, window_bounds = array<i64: 512, 896>}, {pipeline_mode = #tpu.pipeline_mode<synchronous>, transform_indices = @transform_4, window_bounds = array<i64: 1, 896>}, {transform_indices = @transform_5, window_bounds = array<i64: 16, 896>}]} {
    %c0 = arith.constant 0 : index
    %c0_0 = arith.constant 0 : index
    %0 = vector.load %arg1[%c0, %c0_0] : memref<16x896xf32, #tpu.memory_space<vmem>>, vector<16x896xf32>
    %1 = arith.truncf %0 : vector<16x896xf32> to vector<16x896xbf16>
    %c0_1 = arith.constant 0 : index
    %c0_2 = arith.constant 0 : index
    %2 = vector.load %arg2[%c0_1, %c0_2] : memref<896x512xbf16, #tpu.memory_space<vmem>>, vector<896x512xbf16>
    %cst = arith.constant dense<0.000000e+00> : vector<16x512xf32>
    %3 = tpu.matmul %1, %2, %cst {dimension_numbers = #tpu.dot_dimension_numbers<[1], [0], [0], [1], [0, 0, 1, 1], [], []>} : vector<16x896xbf16>, vector<896x512xbf16>, vector<16x512xf32> -> vector<16x512xf32>
    %c0_3 = arith.constant 0 : index
    %c0_4 = arith.constant 0 : index
    %4 = vector.load %arg3[%c0_3, %c0_4] : memref<1x512xf32, #tpu.memory_space<vmem>>, vector<1x512xf32>
    %5 = vector.broadcast %4 : vector<1x512xf32> to vector<16x512xf32>
    %6 = arith.addf %3, %5 : vector<16x512xf32>
    %7 = arith.truncf %6 : vector<16x512xf32> to vector<16x512xbf16>
    %c0_5 = arith.constant 0 : index
    %c0_6 = arith.constant 0 : index
    %8 = vector.load %arg4[%c0_5, %c0_6] : memref<512x896xbf16, #tpu.memory_space<vmem>>, vector<512x896xbf16>
    %cst_7 = arith.constant dense<0.000000e+00> : vector<16x896xf32>
    %9 = tpu.matmul %7, %8, %cst_7 {dimension_numbers = #tpu.dot_dimension_numbers<[1], [0], [0], [1], [0, 0, 1, 1], [], []>} : vector<16x512xbf16>, vector<512x896xbf16>, vector<16x896xf32> -> vector<16x896xf32>
    %c0_8 = arith.constant 0 : index
    %c0_9 = arith.constant 0 : index
    %10 = vector.load %arg5[%c0_8, %c0_9] : memref<1x896xf32, #tpu.memory_space<vmem>>, vector<1x896xf32>
    %11 = vector.broadcast %10 : vector<1x896xf32> to vector<16x896xf32>
    %12 = arith.addf %9, %11 : vector<16x896xf32>
    %c0_10 = arith.constant 0 : index
    %c0_11 = arith.constant 0 : index
    %13 = vector.load %arg6[%c0_10, %c0_11] : memref<16x896xf32, #tpu.memory_space<vmem>>, vector<16x896xf32>
    tpu.vector_store %arg6[%c0_10, %c0_11], %12 {strides = array<i32>} : memref<16x896xf32, #tpu.memory_space<vmem>>, vector<16x896xf32>,
    return
  }
  func.func @transform_0(%arg0: i32) -> (i32, i32) {
    %c0_i32 = arith.constant 0 : i32
    %c0_i32_0 = arith.constant 0 : i32
    return %arg0, %c0_i32 : i32, i32
  }
  func.func @transform_1(%arg0: i32) -> (i32, i32) {
    %c0_i32 = arith.constant 0 : i32
    %c0_i32_0 = arith.constant 0 : i32
    %c0_i32_1 = arith.constant 0 : i32
    return %c0_i32, %c0_i32_0 : i32, i32
  }
  func.func @transform_2(%arg0: i32) -> (i32, i32) {
    %c0_i32 = arith.constant 0 : i32
    %c0_i32_0 = arith.constant 0 : i32
    %c0_i32_1 = arith.constant 0 : i32
    return %c0_i32, %c0_i32_0 : i32, i32
  }
  func.func @transform_3(%arg0: i32) -> (i32, i32) {
    %c0_i32 = arith.constant 0 : i32
    %c0_i32_0 = arith.constant 0 : i32
    %c0_i32_1 = arith.constant 0 : i32
    return %c0_i32, %c0_i32_0 : i32, i32
  }
  func.func @transform_4(%arg0: i32) -> (i32, i32) {
    %c0_i32 = arith.constant 0 : i32
    %c0_i32_0 = arith.constant 0 : i32
    %c0_i32_1 = arith.constant 0 : i32
    return %c0_i32, %c0_i32_0 : i32, i32
  }
  func.func @transform_5(%arg0: i32) -> (i32, i32) {
    %c0_i32 = arith.constant 0 : i32
    %c0_i32_0 = arith.constant 0 : i32
    return %arg0, %c0_i32 : i32, i32
  }
}

</mosaic_0001>

<llo_original>
// kernel: tpu_custom_call.1
$region0: #{tpu_custom_call.1}
  #allocation0 [shape = 'u32[]', space=smem, size = 0x4, offset = 0x4, fixed_abs, tag = 'smem constant byte address 0x4 - core index']
  #allocation1 [shape = 'u32[144,128]{1,0:T(1,128)}', space=vmem, size = 0x12000, scoped, tag = 'internal scratch']
  %s0 = inlined_call_operand.hbm [shape: f32[16,896], index: 0, kind: input, shape index: {}]
  %s1 = inlined_call_operand.hbm [shape: bf16[896,512], index: 1, kind: input, shape index: {}]
  %s2 = inlined_call_operand.hbm [shape: f32[1,512], index: 2, kind: input, shape index: {}]
  %s3 = inlined_call_operand.hbm [shape: bf16[512,896], index: 3, kind: input, shape index: {}]
  %s4 = inlined_call_operand.vmem [shape: f32[1,896], index: 4, kind: input, shape index: {}]
  %s5 = inlined_call_operand.hbm [shape: f32[16,896], index: 5, kind: output, shape index: {}]
  %s6 = sld [smem:[#allocation0]]
  $region46: #{tpu_custom_call.1} parent=0
    _
  %s8 = ssub.s32 1, %s6
  %s9 = scalar_select 0, %s8, %s6
  $region1: #{tpu_custom_call.1} parent=0
    #allocation2 [shape = 'u8[57344]{0}', space=vmem, size = 0xe000, scoped, tag = 'input window, operand 0, single buffered']
    #allocation3 [shape = 's32[1]{0}', space=sflag, size = 0x4, scoped, tag = 'scoped memory for tpu_custom_call.1']
    #allocation4 [shape = 's32[1]{0}', space=sflag, size = 0x4, scoped, tag = 'scoped memory for tpu_custom_call.1']
    #allocation5 [shape = 'u8[917504]{0}', space=vmem, size = 0xe0000, scoped, tag = 'input window, operand 1, single buffered']
    #allocation6 [shape = 's32[1]{0}', space=sflag, size = 0x4, scoped, tag = 'scoped memory for tpu_custom_call.1']
    #allocation7 [shape = 'u8[2048]{0}', space=vmem, size = 0x800, scoped, tag = 'input window, operand 2, single buffered']
    #allocation8 [shape = 'u8[917504]{0}', space=vmem, size = 0xe0000, scoped, tag = 'input window, operand 3, single buffered']
    #allocation9 [shape = 's32[1]{0}', space=sflag, size = 0x4, scoped, tag = 'scoped memory for tpu_custom_call.1']
    #allocation10 [shape = 'u8[57344]{0}', space=vmem, size = 0xe000, scoped, tag = 'output window, operand 0, single buffered']
    %10 = vsyncpa [#allocation3], 0
    %11 = vsyncpa [#allocation6], 0
    %12 = vsyncpa [#allocation9], 0
    %13 = vsyncpa [#allocation4], 0
    // Predicated region
    $region2: #{tpu_custom_call.1} parent=1 // pred_check
      _
    $region3: #{tpu_custom_call.1} parent=1 // pred_check_branch
      %15 = sbr.rel (0) target = $region5
    $region4: #{tpu_custom_call.1} parent=1 // pred_region
      %s17 = ssub.s32 1792, 1792
      %18 = vsyncadd [#allocation3], %s17
      %s19 = sshll.u32 [#allocation2], 4
      %s20 = int_to_ptr.vmem [resolvable:$true] %s19
      %25 = dma.hbm_to_vmem [thread:$0]  %s0, 1792, %s20, [#allocation3], 896, 896, 56
    $region5: #{tpu_custom_call.1} parent=1 // pred_fallthru
      _
    // Predicated region
    $region6: #{tpu_custom_call.1} parent=1 // pred_check
      _
    $region7: #{tpu_custom_call.1} parent=1 // pred_check_branch
      %27 = sbr.rel (0) target = $region9
    $region8: #{tpu_custom_call.1} parent=1 // pred_region
      %s29 = ssub.s32 28672, 28672
      %30 = vsyncadd [#allocation6], %s29
      %s31 = sshll.u32 [#allocation5], 4
      %s32 = int_to_ptr.vmem [resolvable:$true] %s31
      %37 = dma.hbm_to_vmem [thread:$0]  %s1, 28672, %s32, [#allocation6], 256, 256, 16
    $region9: #{tpu_custom_call.1} parent=1 // pred_fallthru
      _
    // Predicated region
    $region10: #{tpu_custom_call.1} parent=1 // pred_check
      _
    $region11: #{tpu_custom_call.1} parent=1 // pred_check_branch
      %39 = sbr.rel (0) target = $region13
    $region12: #{tpu_custom_call.1} parent=1 // pred_region
      %s41 = ssub.s32 64, 64
      %42 = vsyncadd [#allocation6], %s41
      %s44 = sshll.u32 [#allocation7], 4
      %s45 = int_to_ptr.vmem [resolvable:$true] %s44
      %47 = dma.hbm_to_vmem [thread:$0]  %s2, 64, %s45, [#allocation6]
    $region13: #{tpu_custom_call.1} parent=1 // pred_fallthru
      _
    // Predicated region
    $region14: #{tpu_custom_call.1} parent=1 // pred_check
      _
    $region15: #{tpu_custom_call.1} parent=1 // pred_check_branch
      %49 = sbr.rel (0) target = $region17
    $region16: #{tpu_custom_call.1} parent=1 // pred_region
      %s51 = ssub.s32 28672, 28672
      %52 = vsyncadd [#allocation9], %s51
      %s53 = sshll.u32 [#allocation8], 4
      %s54 = int_to_ptr.vmem [resolvable:$true] %s53
      %59 = dma.hbm_to_vmem [thread:$0]  %s3, 28672, %s54, [#allocation9], 448, 448, 28
    $region17: #{tpu_custom_call.1} parent=1 // pred_fallthru
      _
    // Predicated region
    $region18: #{tpu_custom_call.1} parent=1 // pred_check
      _
    $region19: #{tpu_custom_call.1} parent=1 // pred_check_branch
      %61 = sbr.rel (0) target = $region21
    $region20: #{tpu_custom_call.1} parent=1 // pred_region
      _
    $region21: #{tpu_custom_call.1} parent=1 // pred_fallthru
      _
    // Predicated region
    $region22: #{tpu_custom_call.1} parent=1 // pred_check
      _
    $region23: #{tpu_custom_call.1} parent=1 // pred_check_branch
      %63 = sbr.rel (0) target = $region25
    $region24: #{tpu_custom_call.1} parent=1 // pred_region
      %64 = dma.done [#allocation3], 1792
    $region25: #{tpu_custom_call.1} parent=1 // pred_fallthru
      _
    // Predicated region
    $region26: #{tpu_custom_call.1} parent=1 // pred_check
      _
    $region27: #{tpu_custom_call.1} parent=1 // pred_check_branch
      %66 = sbr.rel (0) target = $region29
    $region28: #{tpu_custom_call.1} parent=1 // pred_region
      %67 = dma.done [#allocation6], 28672
    $region29: #{tpu_custom_call.1} parent=1 // pred_fallthru
      _
    // Predicated region
    $region30: #{tpu_custom_call.1} parent=1 // pred_check
      _
    $region31: #{tpu_custom_call.1} parent=1 // pred_check_branch
      %69 = sbr.rel (0) target = $region33
    $region32: #{tpu_custom_call.1} parent=1 // pred_region
      %70 = dma.done [#allocation6], 64
    $region33: #{tpu_custom_call.1} parent=1 // pred_fallthru
      _
    // Predicated region
    $region34: #{tpu_custom_call.1} parent=1 // pred_check
      _
    $region35: #{tpu_custom_call.1} parent=1 // pred_check_branch
      %72 = sbr.rel (0) target = $region37
    $region36: #{tpu_custom_call.1} parent=1 // pred_region
      %73 = dma.done [#allocation9], 28672
    $region37: #{tpu_custom_call.1} parent=1 // pred_fallthru
      _
    %v75 = vld [vmem:[#allocation2] sm:$0xff]
    %v76 = vld [vmem:[#allocation2 + $0x8] sm:$0xff]
    %v77 = vld [vmem:[#allocation2 + $0x10] sm:$0xff]
    %v78 = vld [vmem:[#allocation2 + $0x18] sm:$0xff]
    %v79 = vld [vmem:[#allocation2 + $0x20] sm:$0xff]
    %v80 = vld [vmem:[#allocation2 + $0x28] sm:$0xff]
    %v81 = vld [vmem:[#allocation2 + $0x30] sm:$0xff]
    %v82 = vld [vmem:[#allocation2 + $0x38] sm:$0xff]
    %v83 = vld [vmem:[#allocation2 + $0x40] sm:$0xff]
    %v84 = vld [vmem:[#allocation2 + $0x48] sm:$0xff]
    %v85 = vld [vmem:[#allocation2 + $0x50] sm:$0xff]
    %v86 = vld [vmem:[#allocation2 + $0x58] sm:$0xff]
    %v87 = vld [vmem:[#allocation2 + $0x60] sm:$0xff]
    %v88 = vld [vmem:[#allocation2 + $0x68] sm:$0xff]
    %v89 = vpack.c.bf16 %v82, %v75
    %v90 = vpack.c.bf16 %v83, %v76
    %v91 = vpack.c.bf16 %v84, %v77
    %v92 = vpack.c.bf16 %v85, %v78
    %v93 = vpack.c.bf16 %v86, %v79
    %v94 = vpack.c.bf16 %v87, %v80
    %v95 = vpack.c.bf16 %v88, %v81
    %v96 = vld [vmem:[#allocation5] sm:$0xff]
    %v97 = vld [vmem:[#allocation5 + $0x8] sm:$0xff]
    %v98 = vld [vmem:[#allocation5 + $0x10] sm:$0xff]
    %v99 = vld [vmem:[#allocation5 + $0x18] sm:$0xff]
    %v100 = vld [vmem:[#allocation5 + $0x20] sm:$0xff]
    %v101 = vld [vmem:[#allocation5 + $0x28] sm:$0xff]
    %v102 = vld [vmem:[#allocation5 + $0x30] sm:$0xff]
    %v103 = vld [vmem:[#allocation5 + $0x38] sm:$0xff]
    %v104 = vld [vmem:[#allocation5 + $0x40] sm:$0xff]
    %v105 = vld [vmem:[#allocation5 + $0x48] sm:$0xff]
    %v106 = vld [vmem:[#allocation5 + $0x50] sm:$0xff]
    %v107 = vld [vmem:[#allocation5 + $0x58] sm:$0xff]
    %v108 = vld [vmem:[#allocation5 + $0x60] sm:$0xff]
    %v109 = vld [vmem:[#allocation5 + $0x68] sm:$0xff]
    %v110 = vld [vmem:[#allocation5 + $0x70] sm:$0xff]
    %v111 = vld [vmem:[#allocation5 + $0x78] sm:$0xff]
    %v112 = vld [vmem:[#allocation5 + $0x80] sm:$0xff]
    %v113 = vld [vmem:[#allocation5 + $0x88] sm:$0xff]
    %v114 = vld [vmem:[#allocation5 + $0x90] sm:$0xff]
    %v115 = vld [vmem:[#allocation5 + $0x98] sm:$0xff]
    %v116 = vld [vmem:[#allocation5 + $0xa0] sm:$0xff]
    %v117 = vld [vmem:[#allocation5 + $0xa8] sm:$0xff]
    %v118 = vld [vmem:[#allocation5 + $0xb0] sm:$0xff]
    %v119 = vld [vmem:[#allocation5 + $0xb8] sm:$0xff]
    %v120 = vld [vmem:[#allocation5 + $0xc0] sm:$0xff]
    %v121 = vld [vmem:[#allocation5 + $0xc8] sm:$0xff]
    %v122 = vld [vmem:[#allocation5 + $0xd0] sm:$0xff]
    %v123 = vld [vmem:[#allocation5 + $0xd8] sm:$0xff]
    %v124 = vld [vmem:[#allocation5 + $0xe0] sm:$0xff]
    %v125 = vld [vmem:[#allocation5 + $0xe8] sm:$0xff]
    %v126 = vld [vmem:[#allocation5 + $0xf0] sm:$0xff]
    %v127 = vld [vmem:[#allocation5 + $0xf8] sm:$0xff]
    %v128 = vld [vmem:[#allocation5 + $0x100] sm:$0xff]
    %v129 = vld [vmem:[#allocation5 + $0x108] sm:$0xff]
    %v130 = vld [vmem:[#allocation5 + $0x110] sm:$0xff]
    %v131 = vld [vmem:[#allocation5 + $0x118] sm:$0xff]
    %v132 = vld [vmem:[#allocation5 + $0x120] sm:$0xff]
    %v133 = vld [vmem:[#allocation5 + $0x128] sm:$0xff]
    %v134 = vld [vmem:[#allocation5 + $0x130] sm:$0xff]
    %v135 = vld [vmem:[#allocation5 + $0x138] sm:$0xff]
    %v136 = vld [vmem:[#allocation5 + $0x140] sm:$0xff]
    %v137 = vld [vmem:[#allocation5 + $0x148] sm:$0xff]
    %v138 = vld [vmem:[#allocation5 + $0x150] sm:$0xff]
    %v139 = vld [vmem:[#allocation5 + $0x158] sm:$0xff]
    %v140 = vld [vmem:[#allocation5 + $0x160] sm:$0xff]
    %v141 = vld [vmem:[#allocation5 + $0x168] sm:$0xff]
    %v142 = vld [vmem:[#allocation5 + $0x170] sm:$0xff]
    %v143 = vld [vmem:[#allocation5 + $0x178] sm:$0xff]
    %v144 = vld [vmem:[#allocation5 + $0x180] sm:$0xff]
    %v145 = vld [vmem:[#allocation5 + $0x188] sm:$0xff]
    %v146 = vld [vmem:[#allocation5 + $0x190] sm:$0xff]
    %v147 = vld [vmem:[#allocation5 + $0x198] sm:$0xff]
    %v148 = vld [vmem:[#allocation5 + $0x1a0] sm:$0xff]
    %v149 = vld [vmem:[#allocation5 + $0x1a8] sm:$0xff]
    %v150 = vld [vmem:[#allocation5 + $0x1b0] sm:$0xff]
    %v151 = vld [vmem:[#allocation5 + $0x1b8] sm:$0xff]
    %v152 = vld [vmem:[#allocation5 + $0x1c0] sm:$0xff]
    %v153 = vld [vmem:[#allocation5 + $0x1c8] sm:$0xff]
    %v154 = vld [vmem:[#allocation5 + $0x1d0] sm:$0xff]
    %v155 = vld [vmem:[#allocation5 + $0x1d8] sm:$0xff]
    %v156 = vld [vmem:[#allocation5 + $0x1e0] sm:$0xff]
    %v157 = vld [vmem:[#allocation5 + $0x1e8] sm:$0xff]
    %v158 = vld [vmem:[#allocation5 + $0x1f0] sm:$0xff]
    %v159 = vld [vmem:[#allocation5 + $0x1f8] sm:$0xff]
    %v160 = vld [vmem:[#allocation5 + $0x200] sm:$0xff]
    %v161 = vld [vmem:[#allocation5 + $0x208] sm:$0xff]
    %v162 = vld [vmem:[#allocation5 + $0x210] sm:$0xff]
    %v163 = vld [vmem:[#allocation5 + $0x218] sm:$0xff]
    %v164 = vld [vmem:[#allocation5 + $0x220] sm:$0xff]
    %v165 = vld [vmem:[#allocation5 + $0x228] sm:$0xff]
    %v166 = vld [vmem:[#allocation5 + $0x230] sm:$0xff]
    %v167 = vld [vmem:[#allocation5 + $0x238] sm:$0xff]
    %v168 = vld [vmem:[#allocation5 + $0x240] sm:$0xff]
    %v169 = vld [vmem:[#allocation5 + $0x248] sm:$0xff]
    %v170 = vld [vmem:[#allocation5 + $0x250] sm:$0xff]
    %v171 = vld [vmem:[#allocation5 + $0x258] sm:$0xff]
    %v172 = vld [vmem:[#allocation5 + $0x260] sm:$0xff]
    %v173 = vld [vmem:[#allocation5 + $0x268] sm:$0xff]
    %v174 = vld [vmem:[#allocation5 + $0x270] sm:$0xff]
    %v175 = vld [vmem:[#allocation5 + $0x278] sm:$0xff]
    %v176 = vld [vmem:[#allocation5 + $0x280] sm:$0xff]
    %v177 = vld [vmem:[#allocation5 + $0x288] sm:$0xff]
    %v178 = vld [vmem:[#allocation5 + $0x290] sm:$0xff]
    %v179 = vld [vmem:[#allocation5 + $0x298] sm:$0xff]
    %v180 = vld [vmem:[#allocation5 + $0x2a0] sm:$0xff]
    %v181 = vld [vmem:[#allocation5 + $0x2a8] sm:$0xff]
    %v182 = vld [vmem:[#allocation5 + $0x2b0] sm:$0xff]
    %v183 = vld [vmem:[#allocation5 + $0x2b8] sm:$0xff]
    %v184 = vld [vmem:[#allocation5 + $0x2c0] sm:$0xff]
    %v185 = vld [vmem:[#allocation5 + $0x2c8] sm:$0xff]
    %v186 = vld [vmem:[#allocation5 + $0x2d0] sm:$0xff]
    %v187 = vld [vmem:[#allocation5 + $0x2d8] sm:$0xff]
    %v188 = vld [vmem:[#allocation5 + $0x2e0] sm:$0xff]
    %v189 = vld [vmem:[#allocation5 + $0x2e8] sm:$0xff]
    %v190 = vld [vmem:[#allocation5 + $0x2f0] sm:$0xff]
    %v191 = vld [vmem:[#allocation5 + $0x2f8] sm:$0xff]
    %v192 = vld [vmem:[#allocation5 + $0x300] sm:$0xff]
    %v193 = vld [vmem:[#allocation5 + $0x308] sm:$0xff]
    %v194 = vld [vmem:[#allocation5 + $0x310] sm:$0xff]
    %v195 = vld [vmem:[#allocation5 + $0x318] sm:$0xff]
    %v196 = vld [vmem:[#allocation5 + $0x320] sm:$0xff]
    %v197 = vld [vmem:[#allocation5 + $0x328] sm:$0xff]
    %v198 = vld [vmem:[#allocation5 + $0x330] sm:$0xff]
    %v199 = vld [vmem:[#allocation5 + $0x338] sm:$0xff]
    %v200 = vld [vmem:[#allocation5 + $0x340] sm:$0xff]
    %v201 = vld [vmem:[#allocation5 + $0x348] sm:$0xff]
    %v202 = vld [vmem:[#allocation5 + $0x350] sm:$0xff]
    %v203 = vld [vmem:[#allocation5 + $0x358] sm:$0xff]
    %v204 = vld [vmem:[#allocation5 + $0x360] sm:$0xff]
    %v205 = vld [vmem:[#allocation5 + $0x368] sm:$0xff]
    %v206 = vld [vmem:[#allocation5 + $0x370] sm:$0xff]
    %v207 = vld [vmem:[#allocation5 + $0x378] sm:$0xff]
    %v208 = vld [vmem:[#allocation5 + $0x380] sm:$0xff]
    %v209 = vld [vmem:[#allocation5 + $0x388] sm:$0xff]
    %v210 = vld [vmem:[#allocation5 + $0x390] sm:$0xff]
    %v211 = vld [vmem:[#allocation5 + $0x398] sm:$0xff]
    %v212 = vld [vmem:[#allocation5 + $0x3a0] sm:$0xff]
    %v213 = vld [vmem:[#allocation5 + $0x3a8] sm:$0xff]
    %v214 = vld [vmem:[#allocation5 + $0x3b0] sm:$0xff]
    %v215 = vld [vmem:[#allocation5 + $0x3b8] sm:$0xff]
    %v216 = vld [vmem:[#allocation5 + $0x3c0] sm:$0xff]
    %v217 = vld [vmem:[#allocation5 + $0x3c8] sm:$0xff]
    %v218 = vld [vmem:[#allocation5 + $0x3d0] sm:$0xff]
    %v219 = vld [vmem:[#allocation5 + $0x3d8] sm:$0xff]
    %v220 = vld [vmem:[#allocation5 + $0x3e0] sm:$0xff]
    %v221 = vld [vmem:[#allocation5 + $0x3e8] sm:$0xff]
    %v222 = vld [vmem:[#allocation5 + $0x3f0] sm:$0xff]
    %v223 = vld [vmem:[#allocation5 + $0x3f8] sm:$0xff]
    %v224 = vld [vmem:[#allocation5 + $0x400] sm:$0xff]
    %v225 = vld [vmem:[#allocation5 + $0x408] sm:$0xff]
    %v226 = vld [vmem:[#allocation5 + $0x410] sm:$0xff]
    %v227 = vld [vmem:[#allocation5 + $0x418] sm:$0xff]
    %v228 = vld [vmem:[#allocation5 + $0x420] sm:$0xff]
    %v229 = vld [vmem:[#allocation5 + $0x428] sm:$0xff]
    %v230 = vld [vmem:[#allocation5 + $0x430] sm:$0xff]
    %v231 = vld [vmem:[#allocation5 + $0x438] sm:$0xff]
    %v232 = vld [vmem:[#allocation5 + $0x440] sm:$0xff]
    %v233 = vld [vmem:[#allocation5 + $0x448] sm:$0xff]
    %v234 = vld [vmem:[#allocation5 + $0x450] sm:$0xff]
    %v235 = vld [vmem:[#allocation5 + $0x458] sm:$0xff]
    %v236 = vld [vmem:[#allocation5 + $0x460] sm:$0xff]
    %v237 = vld [vmem:[#allocation5 + $0x468] sm:$0xff]
    %v238 = vld [vmem:[#allocation5 + $0x470] sm:$0xff]
    %v239 = vld [vmem:[#allocation5 + $0x478] sm:$0xff]
    %v240 = vld [vmem:[#allocation5 + $0x480] sm:$0xff]
    %v241 = vld [vmem:[#allocation5 + $0x488] sm:$0xff]
    %v242 = vld [vmem:[#allocation5 + $0x490] sm:$0xff]
    %v243 = vld [vmem:[#allocation5 + $0x498] sm:$0xff]
    %v244 = vld [vmem:[#allocation5 + $0x4a0] sm:$0xff]
    %v245 = vld [vmem:[#allocation5 + $0x4a8] sm:$0xff]
    %v246 = vld [vmem:[#allocation5 + $0x4b0] sm:$0xff]
    %v247 = vld [vmem:[#allocation5 + $0x4b8] sm:$0xff]
    %v248 = vld [vmem:[#allocation5 + $0x4c0] sm:$0xff]
    %v249 = vld [vmem:[#allocation5 + $0x4c8] sm:$0xff]
    %v250 = vld [vmem:[#allocation5 + $0x4d0] sm:$0xff]
    %v251 = vld [vmem:[#allocation5 + $0x4d8] sm:$0xff]
    %v252 = vld [vmem:[#allocation5 + $0x4e0] sm:$0xff]
    %v253 = vld [vmem:[#allocation5 + $0x4e8] sm:$0xff]
    %v254 = vld [vmem:[#allocation5 + $0x4f0] sm:$0xff]
    %v255 = vld [vmem:[#allocation5 + $0x4f8] sm:$0xff]
    %v256 = vld [vmem:[#allocation5 + $0x500] sm:$0xff]
    %v257 = vld [vmem:[#allocation5 + $0x508] sm:$0xff]
    %v258 = vld [vmem:[#allocation5 + $0x510] sm:$0xff]
    %v259 = vld [vmem:[#allocation5 + $0x518] sm:$0xff]
    %v260 = vld [vmem:[#allocation5 + $0x520] sm:$0xff]
    %v261 = vld [vmem:[#allocation5 + $0x528] sm:$0xff]
    %v262 = vld [vmem:[#allocation5 + $0x530] sm:$0xff]
    %v263 = vld [vmem:[#allocation5 + $0x538] sm:$0xff]
    %v264 = vld [vmem:[#allocation5 + $0x540] sm:$0xff]
    %v265 = vld [vmem:[#allocation5 + $0x548] sm:$0xff]
    %v266 = vld [vmem:[#allocation5 + $0x550] sm:$0xff]
    %v267 = vld [vmem:[#allocation5 + $0x558] sm:$0xff]
    %v268 = vld [vmem:[#allocation5 + $0x560] sm:$0xff]
    %v269 = vld [vmem:[#allocation5 + $0x568] sm:$0xff]
    %v270 = vld [vmem:[#allocation5 + $0x570] sm:$0xff]
    %v271 = vld [vmem:[#allocation5 + $0x578] sm:$0xff]
    %v272 = vld [vmem:[#allocation5 + $0x580] sm:$0xff]
    %v273 = vld [vmem:[#allocation5 + $0x588] sm:$0xff]
    %v274 = vld [vmem:[#allocation5 + $0x590] sm:$0xff]
    %v275 = vld [vmem:[#allocation5 + $0x598] sm:$0xff]
    %v276 = vld [vmem:[#allocation5 + $0x5a0] sm:$0xff]
    %v277 = vld [vmem:[#allocation5 + $0x5a8] sm:$0xff]
    %v278 = vld [vmem:[#allocation5 + $0x5b0] sm:$0xff]
    %v279 = vld [vmem:[#allocation5 + $0x5b8] sm:$0xff]
    %v280 = vld [vmem:[#allocation5 + $0x5c0] sm:$0xff]
    %v281 = vld [vmem:[#allocation5 + $0x5c8] sm:$0xff]
    %v282 = vld [vmem:[#allocation5 + $0x5d0] sm:$0xff]
    %v283 = vld [vmem:[#allocation5 + $0x5d8] sm:$0xff]
    %v284 = vld [vmem:[#allocation5 + $0x5e0] sm:$0xff]
    %v285 = vld [vmem:[#allocation5 + $0x5e8] sm:$0xff]
    %v286 = vld [vmem:[#allocation5 + $0x5f0] sm:$0xff]
    %v287 = vld [vmem:[#allocation5 + $0x5f8] sm:$0xff]
    %v288 = vld [vmem:[#allocation5 + $0x600] sm:$0xff]
    %v289 = vld [vmem:[#allocation5 + $0x608] sm:$0xff]
    %v290 = vld [vmem:[#allocation5 + $0x610] sm:$0xff]
    %v291 = vld [vmem:[#allocation5 + $0x618] sm:$0xff]
    %v292 = vld [vmem:[#allocation5 + $0x620] sm:$0xff]
    %v293 = vld [vmem:[#allocation5 + $0x628] sm:$0xff]
    %v294 = vld [vmem:[#allocation5 + $0x630] sm:$0xff]
    %v295 = vld [vmem:[#allocation5 + $0x638] sm:$0xff]
    %v296 = vld [vmem:[#allocation5 + $0x640] sm:$0xff]
    %v297 = vld [vmem:[#allocation5 + $0x648] sm:$0xff]
    %v298 = vld [vmem:[#allocation5 + $0x650] sm:$0xff]
    %v299 = vld [vmem:[#allocation5 + $0x658] sm:$0xff]
    %v300 = vld [vmem:[#allocation5 + $0x660] sm:$0xff]
    %v301 = vld [vmem:[#allocation5 + $0x668] sm:$0xff]
    %v302 = vld [vmem:[#allocation5 + $0x670] sm:$0xff]
    %v303 = vld [vmem:[#allocation5 + $0x678] sm:$0xff]
    %v304 = vld [vmem:[#allocation5 + $0x680] sm:$0xff]
    %v305 = vld [vmem:[#allocation5 + $0x688] sm:$0xff]
    %v306 = vld [vmem:[#allocation5 + $0x690] sm:$0xff]
    %v307 = vld [vmem:[#allocation5 + $0x698] sm:$0xff]
    %v308 = vld [vmem:[#allocation5 + $0x6a0] sm:$0xff]
    %v309 = vld [vmem:[#allocation5 + $0x6a8] sm:$0xff]
    %v310 = vld [vmem:[#allocation5 + $0x6b0] sm:$0xff]
    %v311 = vld [vmem:[#allocation5 + $0x6b8] sm:$0xff]
    %v312 = vld [vmem:[#allocation5 + $0x6c0] sm:$0xff]
    %v313 = vld [vmem:[#allocation5 + $0x6c8] sm:$0xff]
    %v314 = vld [vmem:[#allocation5 + $0x6d0] sm:$0xff]
    %v315 = vld [vmem:[#allocation5 + $0x6d8] sm:$0xff]
    %v316 = vld [vmem:[#allocation5 + $0x6e0] sm:$0xff]
    %v317 = vld [vmem:[#allocation5 + $0x6e8] sm:$0xff]
    %v318 = vld [vmem:[#allocation5 + $0x6f0] sm:$0xff]
    %v319 = vld [vmem:[#allocation5 + $0x6f8] sm:$0xff]
    %v320 = vld [vmem:[#allocation7] sm:$0xf]
    %v322 = vlaneseq
    %v323 = vshrl.u32 %v322, 7
    %v324 = vsub.s32 0, %v323
    %v325 = vrot.slane %v320, %v324
    %v326 = vlaneseq
    %v327 = vshrl.u32 %v326, 7
    %v328 = vsub.s32 1, %v327
    %v329 = vrot.slane %v320, %v328
    %v330 = vlaneseq
    %v331 = vshrl.u32 %v330, 7
    %v332 = vsub.s32 2, %v331
    %v333 = vrot.slane %v320, %v332
    %v334 = vlaneseq
    %v335 = vshrl.u32 %v334, 7
    %v336 = vsub.s32 3, %v335
    %v337 = vrot.slane %v320, %v336
    %v566 = vunpack.c.l.b16 %v96
    %v567 = vunpack.c.h.b16 %v96
    %v568 = vunpack.c.l.b16 %v97
    %v569 = vunpack.c.h.b16 %v97
    %v570 = vunpack.c.l.b16 %v98
    %v571 = vunpack.c.h.b16 %v98
    %v572 = vunpack.c.l.b16 %v99
    %v573 = vunpack.c.h.b16 %v99
    %v574 = vunpack.c.l.b16 %v100
    %v575 = vunpack.c.h.b16 %v100
    %v576 = vunpack.c.l.b16 %v101
    %v577 = vunpack.c.h.b16 %v101
    %v578 = vunpack.c.l.b16 %v102
    %v579 = vunpack.c.h.b16 %v102
    %v580 = vunpack.c.l.b16 %v103
    %v581 = vunpack.c.h.b16 %v103
    %v582 = vunpack.c.l.b16 %v104
    %v583 = vunpack.c.h.b16 %v104
    %v584 = vunpack.c.l.b16 %v105
    %v585 = vunpack.c.h.b16 %v105
    %v586 = vunpack.c.l.b16 %v106
    %v587 = vunpack.c.h.b16 %v106
    %v588 = vunpack.c.l.b16 %v107
    %v589 = vunpack.c.h.b16 %v107
    %v590 = vunpack.c.l.b16 %v108
    %v591 = vunpack.c.h.b16 %v108
    %v592 = vunpack.c.l.b16 %v109
    %v593 = vunpack.c.h.b16 %v109
    %v594 = vunpack.c.l.b16 %v110
    %v595 = vunpack.c.h.b16 %v110
    %v596 = vunpack.c.l.b16 %v111
    %v597 = vunpack.c.h.b16 %v111
    %v598 = vunpack.c.l.b16 %v112
    %v599 = vunpack.c.h.b16 %v112
    %v600 = vunpack.c.l.b16 %v113
    %v601 = vunpack.c.h.b16 %v113
    %v602 = vunpack.c.l.b16 %v114
    %v603 = vunpack.c.h.b16 %v114
    %v604 = vunpack.c.l.b16 %v115
    %v605 = vunpack.c.h.b16 %v115
    %v606 = vunpack.c.l.b16 %v116
    %v607 = vunpack.c.h.b16 %v116
    %v608 = vunpack.c.l.b16 %v117
    %v609 = vunpack.c.h.b16 %v117
    %v610 = vunpack.c.l.b16 %v118
    %v611 = vunpack.c.h.b16 %v118
    %v612 = vunpack.c.l.b16 %v119
    %v613 = vunpack.c.h.b16 %v119
    %v614 = vunpack.c.l.b16 %v120
    %v615 = vunpack.c.h.b16 %v120
    %v616 = vunpack.c.l.b16 %v121
    %v617 = vunpack.c.h.b16 %v121
    %v618 = vunpack.c.l.b16 %v122
    %v619 = vunpack.c.h.b16 %v122
    %v620 = vunpack.c.l.b16 %v123
    %v621 = vunpack.c.h.b16 %v123
    %v622 = vunpack.c.l.b16 %v124
    %v623 = vunpack.c.h.b16 %v124
    %v624 = vunpack.c.l.b16 %v125
    %v625 = vunpack.c.h.b16 %v125
    %v626 = vunpack.c.l.b16 %v126
    %v627 = vunpack.c.h.b16 %v126
    %v628 = vunpack.c.l.b16 %v127
    %v629 = vunpack.c.h.b16 %v127
    %v630 = vunpack.c.l.b16 %v128
    %v631 = vunpack.c.h.b16 %v128
    %v632 = vunpack.c.l.b16 %v129
    %v633 = vunpack.c.h.b16 %v129
    %v634 = vunpack.c.l.b16 %v130
    %v635 = vunpack.c.h.b16 %v130
    %v636 = vunpack.c.l.b16 %v131
    %v637 = vunpack.c.h.b16 %v131
    %v638 = vunpack.c.l.b16 %v132
    %v639 = vunpack.c.h.b16 %v132
    %v640 = vunpack.c.l.b16 %v133
    %v641 = vunpack.c.h.b16 %v133
    %v642 = vunpack.c.l.b16 %v134
    %v643 = vunpack.c.h.b16 %v134
    %v644 = vunpack.c.l.b16 %v135
    %v645 = vunpack.c.h.b16 %v135
    %v646 = vunpack.c.l.b16 %v136
    %v647 = vunpack.c.h.b16 %v136
    %v648 = vunpack.c.l.b16 %v137
    %v649 = vunpack.c.h.b16 %v137
    %v650 = vunpack.c.l.b16 %v138
    %v651 = vunpack.c.h.b16 %v138
    %v652 = vunpack.c.l.b16 %v139
    %v653 = vunpack.c.h.b16 %v139
    %v654 = vunpack.c.l.b16 %v140
    %v655 = vunpack.c.h.b16 %v140
    %v656 = vunpack.c.l.b16 %v141
    %v657 = vunpack.c.h.b16 %v141
    %v658 = vunpack.c.l.b16 %v142
    %v659 = vunpack.c.h.b16 %v142
    %v660 = vunpack.c.l.b16 %v143
    %v661 = vunpack.c.h.b16 %v143
    %v662 = vunpack.c.l.b16 %v144
    %v663 = vunpack.c.h.b16 %v144
    %v664 = vunpack.c.l.b16 %v145
    %v665 = vunpack.c.h.b16 %v145
    %v666 = vunpack.c.l.b16 %v146
    %v667 = vunpack.c.h.b16 %v146
    %v668 = vunpack.c.l.b16 %v147
    %v669 = vunpack.c.h.b16 %v147
    %v670 = vunpack.c.l.b16 %v148
    %v671 = vunpack.c.h.b16 %v148
    %v672 = vunpack.c.l.b16 %v149
    %v673 = vunpack.c.h.b16 %v149
    %v674 = vunpack.c.l.b16 %v150
    %v675 = vunpack.c.h.b16 %v150
    %v676 = vunpack.c.l.b16 %v151
    %v677 = vunpack.c.h.b16 %v151
    %v678 = vunpack.c.l.b16 %v152
    %v679 = vunpack.c.h.b16 %v152
    %v680 = vunpack.c.l.b16 %v153
    %v681 = vunpack.c.h.b16 %v153
    %v682 = vunpack.c.l.b16 %v154
    %v683 = vunpack.c.h.b16 %v154
    %v684 = vunpack.c.l.b16 %v155
    %v685 = vunpack.c.h.b16 %v155
    %v686 = vunpack.c.l.b16 %v156
    %v687 = vunpack.c.h.b16 %v156
    %v688 = vunpack.c.l.b16 %v157
    %v689 = vunpack.c.h.b16 %v157
    %v690 = vunpack.c.l.b16 %v158
    %v691 = vunpack.c.h.b16 %v158
    %v692 = vunpack.c.l.b16 %v159
    %v693 = vunpack.c.h.b16 %v159
    %v694 = vunpack.c.l.b16 %v160
    %v695 = vunpack.c.h.b16 %v160
    %v696 = vunpack.c.l.b16 %v161
    %v697 = vunpack.c.h.b16 %v161
    %v698 = vunpack.c.l.b16 %v162
    %v699 = vunpack.c.h.b16 %v162
    %v700 = vunpack.c.l.b16 %v163
    %v701 = vunpack.c.h.b16 %v163
    %v702 = vunpack.c.l.b16 %v164
    %v703 = vunpack.c.h.b16 %v164
    %v704 = vunpack.c.l.b16 %v165
    %v705 = vunpack.c.h.b16 %v165
    %v706 = vunpack.c.l.b16 %v166
    %v707 = vunpack.c.h.b16 %v166
    %v708 = vunpack.c.l.b16 %v167
    %v709 = vunpack.c.h.b16 %v167
    %v710 = vunpack.c.l.b16 %v168
    %v711 = vunpack.c.h.b16 %v168
    %v712 = vunpack.c.l.b16 %v169
    %v713 = vunpack.c.h.b16 %v169
    %v714 = vunpack.c.l.b16 %v170
    %v715 = vunpack.c.h.b16 %v170
    %v716 = vunpack.c.l.b16 %v171
    %v717 = vunpack.c.h.b16 %v171
    %v718 = vunpack.c.l.b16 %v172
    %v719 = vunpack.c.h.b16 %v172
    %v720 = vunpack.c.l.b16 %v173
    %v721 = vunpack.c.h.b16 %v173
    %v722 = vunpack.c.l.b16 %v174
    %v723 = vunpack.c.h.b16 %v174
    %v724 = vunpack.c.l.b16 %v175
    %v725 = vunpack.c.h.b16 %v175
    %v726 = vunpack.c.l.b16 %v176
    %v727 = vunpack.c.h.b16 %v176
    %v728 = vunpack.c.l.b16 %v177
    %v729 = vunpack.c.h.b16 %v177
    %v730 = vunpack.c.l.b16 %v178
    %v731 = vunpack.c.h.b16 %v178
    %v732 = vunpack.c.l.b16 %v179
    %v733 = vunpack.c.h.b16 %v179
    %v734 = vunpack.c.l.b16 %v180
    %v735 = vunpack.c.h.b16 %v180
    %v736 = vunpack.c.l.b16 %v181
    %v737 = vunpack.c.h.b16 %v181
    %v738 = vunpack.c.l.b16 %v182
    %v739 = vunpack.c.h.b16 %v182
    %v740 = vunpack.c.l.b16 %v183
    %v741 = vunpack.c.h.b16 %v183
    %v742 = vunpack.c.l.b16 %v184
    %v743 = vunpack.c.h.b16 %v184
    %v744 = vunpack.c.l.b16 %v185
    %v745 = vunpack.c.h.b16 %v185
    %v746 = vunpack.c.l.b16 %v186
    %v747 = vunpack.c.h.b16 %v186
    %v748 = vunpack.c.l.b16 %v187
    %v749 = vunpack.c.h.b16 %v187
    %v750 = vunpack.c.l.b16 %v188
    %v751 = vunpack.c.h.b16 %v188
    %v752 = vunpack.c.l.b16 %v189
    %v753 = vunpack.c.h.b16 %v189
    %v754 = vunpack.c.l.b16 %v190
    %v755 = vunpack.c.h.b16 %v190
    %v756 = vunpack.c.l.b16 %v191
    %v757 = vunpack.c.h.b16 %v191
    %v758 = vunpack.c.l.b16 %v192
    %v759 = vunpack.c.h.b16 %v192
    %v760 = vunpack.c.l.b16 %v193
    %v761 = vunpack.c.h.b16 %v193
    %v762 = vunpack.c.l.b16 %v194
    %v763 = vunpack.c.h.b16 %v194
    %v764 = vunpack.c.l.b16 %v195
    %v765 = vunpack.c.h.b16 %v195
    %v766 = vunpack.c.l.b16 %v196
    %v767 = vunpack.c.h.b16 %v196
    %v768 = vunpack.c.l.b16 %v197
    %v769 = vunpack.c.h.b16 %v197
    %v770 = vunpack.c.l.b16 %v198
    %v771 = vunpack.c.h.b16 %v198
    %v772 = vunpack.c.l.b16 %v199
    %v773 = vunpack.c.h.b16 %v199
    %v774 = vunpack.c.l.b16 %v200
    %v775 = vunpack.c.h.b16 %v200
    %v776 = vunpack.c.l.b16 %v201
    %v777 = vunpack.c.h.b16 %v201
    %v778 = vunpack.c.l.b16 %v202
    %v779 = vunpack.c.h.b16 %v202
    %v780 = vunpack.c.l.b16 %v203
    %v781 = vunpack.c.h.b16 %v203
    %v782 = vunpack.c.l.b16 %v204
    %v783 = vunpack.c.h.b16 %v204
    %v784 = vunpack.c.l.b16 %v205
    %v785 = vunpack.c.h.b16 %v205
    %v786 = vunpack.c.l.b16 %v206
    %v787 = vunpack.c.h.b16 %v206
    %v788 = vunpack.c.l.b16 %v207
    %v789 = vunpack.c.h.b16 %v207
    %v790 = vunpack.c.l.b16 %v208
    %v791 = vunpack.c.h.b16 %v208
    %v792 = vunpack.c.l.b16 %v209
    %v793 = vunpack.c.h.b16 %v209
    %v794 = vunpack.c.l.b16 %v210
    %v795 = vunpack.c.h.b16 %v210
    %v796 = vunpack.c.l.b16 %v211
    %v797 = vunpack.c.h.b16 %v211
    %v798 = vunpack.c.l.b16 %v212
    %v799 = vunpack.c.h.b16 %v212
    %v800 = vunpack.c.l.b16 %v213
    %v801 = vunpack.c.h.b16 %v213
    %v802 = vunpack.c.l.b16 %v214
    %v803 = vunpack.c.h.b16 %v214
    %v804 = vunpack.c.l.b16 %v215
    %v805 = vunpack.c.h.b16 %v215
    %v806 = vunpack.c.l.b16 %v216
    %v807 = vunpack.c.h.b16 %v216
    %v808 = vunpack.c.l.b16 %v217
    %v809 = vunpack.c.h.b16 %v217
    %v810 = vunpack.c.l.b16 %v218
    %v811 = vunpack.c.h.b16 %v218
    %v812 = vunpack.c.l.b16 %v219
    %v813 = vunpack.c.h.b16 %v219
    %v814 = vunpack.c.l.b16 %v220
    %v815 = vunpack.c.h.b16 %v220
    %v816 = vunpack.c.l.b16 %v221
    %v817 = vunpack.c.h.b16 %v221
    %v818 = vunpack.c.l.b16 %v222
    %v819 = vunpack.c.h.b16 %v222
    %v820 = vunpack.c.l.b16 %v223
    %v821 = vunpack.c.h.b16 %v223
    %v822 = vunpack.c.l.b16 %v224
    %v823 = vunpack.c.h.b16 %v224
    %v824 = vunpack.c.l.b16 %v225
    %v825 = vunpack.c.h.b16 %v225
    %v826 = vunpack.c.l.b16 %v226
    %v827 = vunpack.c.h.b16 %v226
    %v828 = vunpack.c.l.b16 %v227
    %v829 = vunpack.c.h.b16 %v227
    %v830 = vunpack.c.l.b16 %v228
    %v831 = vunpack.c.h.b16 %v228
    %v832 = vunpack.c.l.b16 %v229
    %v833 = vunpack.c.h.b16 %v229
    %v834 = vunpack.c.l.b16 %v230
    %v835 = vunpack.c.h.b16 %v230
    %v836 = vunpack.c.l.b16 %v231
    %v837 = vunpack.c.h.b16 %v231
    %v838 = vunpack.c.l.b16 %v232
    %v839 = vunpack.c.h.b16 %v232
    %v840 = vunpack.c.l.b16 %v233
    %v841 = vunpack.c.h.b16 %v233
    %v842 = vunpack.c.l.b16 %v234
    %v843 = vunpack.c.h.b16 %v234
    %v844 = vunpack.c.l.b16 %v235
    %v845 = vunpack.c.h.b16 %v235
    %v846 = vunpack.c.l.b16 %v236
    %v847 = vunpack.c.h.b16 %v236
    %v848 = vunpack.c.l.b16 %v237
    %v849 = vunpack.c.h.b16 %v237
    %v850 = vunpack.c.l.b16 %v238
    %v851 = vunpack.c.h.b16 %v238
    %v852 = vunpack.c.l.b16 %v239
    %v853 = vunpack.c.h.b16 %v239
    %v854 = vunpack.c.l.b16 %v240
    %v855 = vunpack.c.h.b16 %v240
    %v856 = vunpack.c.l.b16 %v241
    %v857 = vunpack.c.h.b16 %v241
    %v858 = vunpack.c.l.b16 %v242
    %v859 = vunpack.c.h.b16 %v242
    %v860 = vunpack.c.l.b16 %v243
    %v861 = vunpack.c.h.b16 %v243
    %v862 = vunpack.c.l.b16 %v244
    %v863 = vunpack.c.h.b16 %v244
    %v864 = vunpack.c.l.b16 %v245
    %v865 = vunpack.c.h.b16 %v245
    %v866 = vunpack.c.l.b16 %v246
    %v867 = vunpack.c.h.b16 %v246
    %v868 = vunpack.c.l.b16 %v247
    %v869 = vunpack.c.h.b16 %v247
    %v870 = vunpack.c.l.b16 %v248
    %v871 = vunpack.c.h.b16 %v248
    %v872 = vunpack.c.l.b16 %v249
    %v873 = vunpack.c.h.b16 %v249
    %v874 = vunpack.c.l.b16 %v250
    %v875 = vunpack.c.h.b16 %v250
    %v876 = vunpack.c.l.b16 %v251
    %v877 = vunpack.c.h.b16 %v251
    %v878 = vunpack.c.l.b16 %v252
    %v879 = vunpack.c.h.b16 %v252
    %v880 = vunpack.c.l.b16 %v253
    %v881 = vunpack.c.h.b16 %v253
    %v882 = vunpack.c.l.b16 %v254
    %v883 = vunpack.c.h.b16 %v254
    %v884 = vunpack.c.l.b16 %v255
    %v885 = vunpack.c.h.b16 %v255
    %v886 = vunpack.c.l.b16 %v256
    %v887 = vunpack.c.h.b16 %v256
    %v888 = vunpack.c.l.b16 %v257
    %v889 = vunpack.c.h.b16 %v257
    %v890 = vunpack.c.l.b16 %v258
    %v891 = vunpack.c.h.b16 %v258
    %v892 = vunpack.c.l.b16 %v259
    %v893 = vunpack.c.h.b16 %v259
    %v894 = vunpack.c.l.b16 %v260
    %v895 = vunpack.c.h.b16 %v260
    %v896 = vunpack.c.l.b16 %v261
    %v897 = vunpack.c.h.b16 %v261
    %v898 = vunpack.c.l.b16 %v262
    %v899 = vunpack.c.h.b16 %v262
    %v900 = vunpack.c.l.b16 %v263
    %v901 = vunpack.c.h.b16 %v263
    %v902 = vunpack.c.l.b16 %v264
    %v903 = vunpack.c.h.b16 %v264
    %v904 = vunpack.c.l.b16 %v265
    %v905 = vunpack.c.h.b16 %v265
    %v906 = vunpack.c.l.b16 %v266
    %v907 = vunpack.c.h.b16 %v266
    %v908 = vunpack.c.l.b16 %v267
    %v909 = vunpack.c.h.b16 %v267
    %v910 = vunpack.c.l.b16 %v268
    %v911 = vunpack.c.h.b16 %v268
    %v912 = vunpack.c.l.b16 %v269
    %v913 = vunpack.c.h.b16 %v269
    %v914 = vunpack.c.l.b16 %v270
    %v915 = vunpack.c.h.b16 %v270
    %v916 = vunpack.c.l.b16 %v271
    %v917 = vunpack.c.h.b16 %v271
    %v918 = vunpack.c.l.b16 %v272
    %v919 = vunpack.c.h.b16 %v272
    %v920 = vunpack.c.l.b16 %v273
    %v921 = vunpack.c.h.b16 %v273
    %v922 = vunpack.c.l.b16 %v274
    %v923 = vunpack.c.h.b16 %v274
    %v924 = vunpack.c.l.b16 %v275
    %v925 = vunpack.c.h.b16 %v275
    %v926 = vunpack.c.l.b16 %v276
    %v927 = vunpack.c.h.b16 %v276
    %v928 = vunpack.c.l.b16 %v277
    %v929 = vunpack.c.h.b16 %v277
    %v930 = vunpack.c.l.b16 %v278
    %v931 = vunpack.c.h.b16 %v278
    %v932 = vunpack.c.l.b16 %v279
    %v933 = vunpack.c.h.b16 %v279
    %v934 = vunpack.c.l.b16 %v280
    %v935 = vunpack.c.h.b16 %v280
    %v936 = vunpack.c.l.b16 %v281
    %v937 = vunpack.c.h.b16 %v281
    %v938 = vunpack.c.l.b16 %v282
    %v939 = vunpack.c.h.b16 %v282
    %v940 = vunpack.c.l.b16 %v283
    %v941 = vunpack.c.h.b16 %v283
    %v942 = vunpack.c.l.b16 %v284
    %v943 = vunpack.c.h.b16 %v284
    %v944 = vunpack.c.l.b16 %v285
    %v945 = vunpack.c.h.b16 %v285
    %v946 = vunpack.c.l.b16 %v286
    %v947 = vunpack.c.h.b16 %v286
    %v948 = vunpack.c.l.b16 %v287
    %v949 = vunpack.c.h.b16 %v287
    %v950 = vunpack.c.l.b16 %v288
    %v951 = vunpack.c.h.b16 %v288
    %v952 = vunpack.c.l.b16 %v289
    %v953 = vunpack.c.h.b16 %v289
    %v954 = vunpack.c.l.b16 %v290
    %v955 = vunpack.c.h.b16 %v290
    %v956 = vunpack.c.l.b16 %v291
    %v957 = vunpack.c.h.b16 %v291
    %v958 = vunpack.c.l.b16 %v292
    %v959 = vunpack.c.h.b16 %v292
    %v960 = vunpack.c.l.b16 %v293
    %v961 = vunpack.c.h.b16 %v293
    %v962 = vunpack.c.l.b16 %v294
    %v963 = vunpack.c.h.b16 %v294
    %v964 = vunpack.c.l.b16 %v295
    %v965 = vunpack.c.h.b16 %v295
    %v966 = vunpack.c.l.b16 %v296
    %v967 = vunpack.c.h.b16 %v296
    %v968 = vunpack.c.l.b16 %v297
    %v969 = vunpack.c.h.b16 %v297
    %v970 = vunpack.c.l.b16 %v298
    %v971 = vunpack.c.h.b16 %v298
    %v972 = vunpack.c.l.b16 %v299
    %v973 = vunpack.c.h.b16 %v299
    %v974 = vunpack.c.l.b16 %v300
    %v975 = vunpack.c.h.b16 %v300
    %v976 = vunpack.c.l.b16 %v301
    %v977 = vunpack.c.h.b16 %v301
    %v978 = vunpack.c.l.b16 %v302
    %v979 = vunpack.c.h.b16 %v302
    %v980 = vunpack.c.l.b16 %v303
    %v981 = vunpack.c.h.b16 %v303
    %v982 = vunpack.c.l.b16 %v304
    %v983 = vunpack.c.h.b16 %v304
    %v984 = vunpack.c.l.b16 %v305
    %v985 = vunpack.c.h.b16 %v305
    %v986 = vunpack.c.l.b16 %v306
    %v987 = vunpack.c.h.b16 %v306
    %v988 = vunpack.c.l.b16 %v307
    %v989 = vunpack.c.h.b16 %v307
    %v990 = vunpack.c.l.b16 %v308
    %v991 = vunpack.c.h.b16 %v308
    %v992 = vunpack.c.l.b16 %v309
    %v993 = vunpack.c.h.b16 %v309
    %v994 = vunpack.c.l.b16 %v310
    %v995 = vunpack.c.h.b16 %v310
    %v996 = vunpack.c.l.b16 %v311
    %v997 = vunpack.c.h.b16 %v311
    %v998 = vunpack.c.l.b16 %v312
    %v999 = vunpack.c.h.b16 %v312
    %v1000 = vunpack.c.l.b16 %v313
    %v1001 = vunpack.c.h.b16 %v313
    %v1002 = vunpack.c.l.b16 %v314
    %v1003 = vunpack.c.h.b16 %v314
    %v1004 = vunpack.c.l.b16 %v315
    %v1005 = vunpack.c.h.b16 %v315
    %v1006 = vunpack.c.l.b16 %v316
    %v1007 = vunpack.c.h.b16 %v316
    %v1008 = vunpack.c.l.b16 %v317
    %v1009 = vunpack.c.h.b16 %v317
    %v1010 = vunpack.c.l.b16 %v318
    %v1011 = vunpack.c.h.b16 %v318
    %v1012 = vunpack.c.l.b16 %v319
    %v1013 = vunpack.c.h.b16 %v319
    %v1014 = vpack.c.b16 %v570, %v566
    %v1015 = vpack.c.b16 %v571, %v567
    %v1016 = vpack.c.b16 %v572, %v568
    %v1017 = vpack.c.b16 %v573, %v569
    %v1018 = vpack.c.b16 %v578, %v574
    %v1019 = vpack.c.b16 %v579, %v575
    %v1020 = vpack.c.b16 %v580, %v576
    %v1021 = vpack.c.b16 %v581, %v577
    %v1022 = vpack.c.b16 %v586, %v582
    %v1023 = vpack.c.b16 %v587, %v583
    %v1024 = vpack.c.b16 %v588, %v584
    %v1025 = vpack.c.b16 %v589, %v585
    %v1026 = vpack.c.b16 %v594, %v590
    %v1027 = vpack.c.b16 %v595, %v591
    %v1028 = vpack.c.b16 %v596, %v592
    %v1029 = vpack.c.b16 %v597, %v593
    %v1030 = vpack.c.b16 %v602, %v598
    %v1031 = vpack.c.b16 %v603, %v599
    %v1032 = vpack.c.b16 %v604, %v600
    %v1033 = vpack.c.b16 %v605, %v601
    %v1034 = vpack.c.b16 %v610, %v606
    %v1035 = vpack.c.b16 %v611, %v607
    %v1036 = vpack.c.b16 %v612, %v608
    %v1037 = vpack.c.b16 %v613, %v609
    %v1038 = vpack.c.b16 %v618, %v614
    %v1039 = vpack.c.b16 %v619, %v615
    %v1040 = vpack.c.b16 %v620, %v616
    %v1041 = vpack.c.b16 %v621, %v617
    %v1042 = vpack.c.b16 %v626, %v622
    %v1043 = vpack.c.b16 %v627, %v623
    %v1044 = vpack.c.b16 %v628, %v624
    %v1045 = vpack.c.b16 %v629, %v625
    %v1046 = vpack.c.b16 %v634, %v630
    %v1047 = vpack.c.b16 %v635, %v631
    %v1048 = vpack.c.b16 %v636, %v632
    %v1049 = vpack.c.b16 %v637, %v633
    %v1050 = vpack.c.b16 %v642, %v638
    %v1051 = vpack.c.b16 %v643, %v639
    %v1052 = vpack.c.b16 %v644, %v640
    %v1053 = vpack.c.b16 %v645, %v641
    %v1054 = vpack.c.b16 %v650, %v646
    %v1055 = vpack.c.b16 %v651, %v647
    %v1056 = vpack.c.b16 %v652, %v648
    %v1057 = vpack.c.b16 %v653, %v649
    %v1058 = vpack.c.b16 %v658, %v654
    %v1059 = vpack.c.b16 %v659, %v655
    %v1060 = vpack.c.b16 %v660, %v656
    %v1061 = vpack.c.b16 %v661, %v657
    %v1062 = vpack.c.b16 %v666, %v662
    %v1063 = vpack.c.b16 %v667, %v663
    %v1064 = vpack.c.b16 %v668, %v664
    %v1065 = vpack.c.b16 %v669, %v665
    %v1066 = vpack.c.b16 %v674, %v670
    %v1067 = vpack.c.b16 %v675, %v671
    %v1068 = vpack.c.b16 %v676, %v672
    %v1069 = vpack.c.b16 %v677, %v673
    %v1070 = vpack.c.b16 %v682, %v678
    %v1071 = vpack.c.b16 %v683, %v679
    %v1072 = vpack.c.b16 %v684, %v680
    %v1073 = vpack.c.b16 %v685, %v681
    %v1074 = vpack.c.b16 %v690, %v686
    %v1075 = vpack.c.b16 %v691, %v687
    %v1076 = vpack.c.b16 %v692, %v688
    %v1077 = vpack.c.b16 %v693, %v689
    %v1078 = vpack.c.b16 %v698, %v694
    %v1079 = vpack.c.b16 %v699, %v695
    %v1080 = vpack.c.b16 %v700, %v696
    %v1081 = vpack.c.b16 %v701, %v697
    %v1082 = vpack.c.b16 %v706, %v702
    %v1083 = vpack.c.b16 %v707, %v703
    %v1084 = vpack.c.b16 %v708, %v704
    %v1085 = vpack.c.b16 %v709, %v705
    %v1086 = vpack.c.b16 %v714, %v710
    %v1087 = vpack.c.b16 %v715, %v711
    %v1088 = vpack.c.b16 %v716, %v712
    %v1089 = vpack.c.b16 %v717, %v713
    %v1090 = vpack.c.b16 %v722, %v718
    %v1091 = vpack.c.b16 %v723, %v719
    %v1092 = vpack.c.b16 %v724, %v720
    %v1093 = vpack.c.b16 %v725, %v721
    %v1094 = vpack.c.b16 %v730, %v726
    %v1095 = vpack.c.b16 %v731, %v727
    %v1096 = vpack.c.b16 %v732, %v728
    %v1097 = vpack.c.b16 %v733, %v729
    %v1098 = vpack.c.b16 %v738, %v734
    %v1099 = vpack.c.b16 %v739, %v735
    %v1100 = vpack.c.b16 %v740, %v736
    %v1101 = vpack.c.b16 %v741, %v737
    %v1102 = vpack.c.b16 %v746, %v742
    %v1103 = vpack.c.b16 %v747, %v743
    %v1104 = vpack.c.b16 %v748, %v744
    %v1105 = vpack.c.b16 %v749, %v745
    %v1106 = vpack.c.b16 %v754, %v750
    %v1107 = vpack.c.b16 %v755, %v751
    %v1108 = vpack.c.b16 %v756, %v752
    %v1109 = vpack.c.b16 %v757, %v753
    %v1110 = vpack.c.b16 %v762, %v758
    %v1111 = vpack.c.b16 %v763, %v759
    %v1112 = vpack.c.b16 %v764, %v760
    %v1113 = vpack.c.b16 %v765, %v761
    %v1114 = vpack.c.b16 %v770, %v766
    %v1115 = vpack.c.b16 %v771, %v767
    %v1116 = vpack.c.b16 %v772, %v768
    %v1117 = vpack.c.b16 %v773, %v769
    %v1118 = vpack.c.b16 %v778, %v774
    %v1119 = vpack.c.b16 %v779, %v775
    %v1120 = vpack.c.b16 %v780, %v776
    %v1121 = vpack.c.b16 %v781, %v777
    %v1122 = vpack.c.b16 %v786, %v782
    %v1123 = vpack.c.b16 %v787, %v783
    %v1124 = vpack.c.b16 %v788, %v784
    %v1125 = vpack.c.b16 %v789, %v785
    %v1126 = vpack.c.b16 %v794, %v790
    %v1127 = vpack.c.b16 %v795, %v791
    %v1128 = vpack.c.b16 %v796, %v792
    %v1129 = vpack.c.b16 %v797, %v793
    %v1130 = vpack.c.b16 %v802, %v798
    %v1131 = vpack.c.b16 %v803, %v799
    %v1132 = vpack.c.b16 %v804, %v800
    %v1133 = vpack.c.b16 %v805, %v801
    %v1134 = vpack.c.b16 %v810, %v806
    %v1135 = vpack.c.b16 %v811, %v807
    %v1136 = vpack.c.b16 %v812, %v808
    %v1137 = vpack.c.b16 %v813, %v809
    %v1138 = vpack.c.b16 %v818, %v814
    %v1139 = vpack.c.b16 %v819, %v815
    %v1140 = vpack.c.b16 %v820, %v816
    %v1141 = vpack.c.b16 %v821, %v817
    %v1142 = vpack.c.b16 %v826, %v822
    %v1143 = vpack.c.b16 %v827, %v823
    %v1144 = vpack.c.b16 %v828, %v824
    %v1145 = vpack.c.b16 %v829, %v825
    %v1146 = vpack.c.b16 %v834, %v830
    %v1147 = vpack.c.b16 %v835, %v831
    %v1148 = vpack.c.b16 %v836, %v832
    %v1149 = vpack.c.b16 %v837, %v833
    %v1150 = vpack.c.b16 %v842, %v838
    %v1151 = vpack.c.b16 %v843, %v839
    %v1152 = vpack.c.b16 %v844, %v840
    %v1153 = vpack.c.b16 %v845, %v841
    %v1154 = vpack.c.b16 %v850, %v846
    %v1155 = vpack.c.b16 %v851, %v847
    %v1156 = vpack.c.b16 %v852, %v848
    %v1157 = vpack.c.b16 %v853, %v849
    %v1158 = vpack.c.b16 %v858, %v854
    %v1159 = vpack.c.b16 %v859, %v855
    %v1160 = vpack.c.b16 %v860, %v856
    %v1161 = vpack.c.b16 %v861, %v857
    %v1162 = vpack.c.b16 %v866, %v862
    %v1163 = vpack.c.b16 %v867, %v863
    %v1164 = vpack.c.b16 %v868, %v864
    %v1165 = vpack.c.b16 %v869, %v865
    %v1166 = vpack.c.b16 %v874, %v870
    %v1167 = vpack.c.b16 %v875, %v871
    %v1168 = vpack.c.b16 %v876, %v872
    %v1169 = vpack.c.b16 %v877, %v873
    %v1170 = vpack.c.b16 %v882, %v878
    %v1171 = vpack.c.b16 %v883, %v879
    %v1172 = vpack.c.b16 %v884, %v880
    %v1173 = vpack.c.b16 %v885, %v881
    %v1174 = vpack.c.b16 %v890, %v886
    %v1175 = vpack.c.b16 %v891, %v887
    %v1176 = vpack.c.b16 %v892, %v888
    %v1177 = vpack.c.b16 %v893, %v889
    %v1178 = vpack.c.b16 %v898, %v894
    %v1179 = vpack.c.b16 %v899, %v895
    %v1180 = vpack.c.b16 %v900, %v896
    %v1181 = vpack.c.b16 %v901, %v897
    %v1182 = vpack.c.b16 %v906, %v902
    %v1183 = vpack.c.b16 %v907, %v903
    %v1184 = vpack.c.b16 %v908, %v904
    %v1185 = vpack.c.b16 %v909, %v905
    %v1186 = vpack.c.b16 %v914, %v910
    %v1187 = vpack.c.b16 %v915, %v911
    %v1188 = vpack.c.b16 %v916, %v912
    %v1189 = vpack.c.b16 %v917, %v913
    %v1190 = vpack.c.b16 %v922, %v918
    %v1191 = vpack.c.b16 %v923, %v919
    %v1192 = vpack.c.b16 %v924, %v920
    %v1193 = vpack.c.b16 %v925, %v921
    %v1194 = vpack.c.b16 %v930, %v926
    %v1195 = vpack.c.b16 %v931, %v927
    %v1196 = vpack.c.b16 %v932, %v928
    %v1197 = vpack.c.b16 %v933, %v929
    %v1198 = vpack.c.b16 %v938, %v934
    %v1199 = vpack.c.b16 %v939, %v935
    %v1200 = vpack.c.b16 %v940, %v936
    %v1201 = vpack.c.b16 %v941, %v937
    %v1202 = vpack.c.b16 %v946, %v942
    %v1203 = vpack.c.b16 %v947, %v943
    %v1204 = vpack.c.b16 %v948, %v944
    %v1205 = vpack.c.b16 %v949, %v945
    %v1206 = vpack.c.b16 %v954, %v950
    %v1207 = vpack.c.b16 %v955, %v951
    %v1208 = vpack.c.b16 %v956, %v952
    %v1209 = vpack.c.b16 %v957, %v953
    %v1210 = vpack.c.b16 %v962, %v958
    %v1211 = vpack.c.b16 %v963, %v959
    %v1212 = vpack.c.b16 %v964, %v960
    %v1213 = vpack.c.b16 %v965, %v961
    %v1214 = vpack.c.b16 %v970, %v966
    %v1215 = vpack.c.b16 %v971, %v967
    %v1216 = vpack.c.b16 %v972, %v968
    %v1217 = vpack.c.b16 %v973, %v969
    %v1218 = vpack.c.b16 %v978, %v974
    %v1219 = vpack.c.b16 %v979, %v975
    %v1220 = vpack.c.b16 %v980, %v976
    %v1221 = vpack.c.b16 %v981, %v977
    %v1222 = vpack.c.b16 %v986, %v982
    %v1223 = vpack.c.b16 %v987, %v983
    %v1224 = vpack.c.b16 %v988, %v984
    %v1225 = vpack.c.b16 %v989, %v985
    %v1226 = vpack.c.b16 %v994, %v990
    %v1227 = vpack.c.b16 %v995, %v991
    %v1228 = vpack.c.b16 %v996, %v992
    %v1229 = vpack.c.b16 %v997, %v993
    %v1230 = vpack.c.b16 %v1002, %v998
    %v1231 = vpack.c.b16 %v1003, %v999
    %v1232 = vpack.c.b16 %v1004, %v1000
    %v1233 = vpack.c.b16 %v1005, %v1001
    %v1234 = vpack.c.b16 %v1010, %v1006
    %v1235 = vpack.c.b16 %v1011, %v1007
    %v1236 = vpack.c.b16 %v1012, %v1008
    %v1237 = vpack.c.b16 %v1013, %v1009
    %1462 = vmatprep.subr.bf16.mxu0 %v1043
    %1463 = vmatpush1.bf16.msra.mxu0 %v1042
    %1464 = vmatprep.subr.bf16.mxu0 %v1039
    %1465 = vmatpush1.bf16.msra.mxu0 %v1038
    %1466 = vmatprep.subr.bf16.mxu0 %v1035
    %1467 = vmatpush1.bf16.msra.mxu0 %v1034
    %1468 = vmatprep.subr.bf16.mxu0 %v1031
    %1469 = vmatpush1.bf16.msra.mxu0 %v1030
    %1470 = vmatprep.subr.bf16.mxu0 %v1027
    %1471 = vmatpush1.bf16.msra.mxu0 %v1026
    %1472 = vmatprep.subr.bf16.mxu0 %v1023
    %1473 = vmatpush1.bf16.msra.mxu0 %v1022
    %1474 = vmatprep.subr.bf16.mxu0 %v1019
    %1475 = vmatpush1.bf16.msra.mxu0 %v1018
    %1476 = vmatprep.subr.bf16.mxu0 %v1015
    %1477 = vmatpush1.bf16.msra.mxu0 %v1014
    %1478 = vmatprep.subr.bf16.mxu0 %v1075
    %1479 = vmatpush2.bf16.msra.mxu0 %v1074
    %1480 = vmatprep.subr.bf16.mxu0 %v1071
    %1481 = vmatpush2.bf16.msra.mxu0 %v1070
    %1482 = vmatprep.subr.bf16.mxu0 %v1067
    %1483 = vmatpush2.bf16.msra.mxu0 %v1066
    %1484 = vmatprep.subr.bf16.mxu0 %v1063
    %1485 = vmatpush2.bf16.msra.mxu0 %v1062
    %1486 = vmatprep.subr.bf16.mxu0 %v1059
    %1487 = vmatpush2.bf16.msra.mxu0 %v1058
    %1488 = vmatprep.subr.bf16.mxu0 %v1055
    %1489 = vmatpush2.bf16.msra.mxu0 %v1054
    %1490 = vmatprep.subr.bf16.mxu0 %v1051
    %1491 = vmatpush2.bf16.msra.mxu0 %v1050
    %1492 = vmatprep.subr.bf16.mxu0 %v1047
    %1493 = vmatpush2.bf16.msra.mxu0 %v1046
    %1494 = vmatprep.mubr.bf16.mxu0 %v90
    %1495 = vmatmul.mubr.bf16.gmra.mxu0 %v89
    %v1496 = vpop.f32.mrf.mxu0
    %v1497 = vadd.f32 %v325, %v1496
    %v1498 = vpop.f32.mrf.mxu0
    %v1499 = vadd.f32 %v329, %v1498
    %v1500 = vpop.f32.mrf.mxu0
    %v1501 = vadd.f32 %v325, %v1500
    %v1502 = vpop.f32.mrf.mxu0
    %v1503 = vadd.f32 %v329, %v1502
    %1504 = vdwg.mxu0
    %1505 = vmatprep.subr.bf16.mxu0 %v1107
    %1506 = vmatpush1.bf16.msra.mxu0 %v1106
    %1507 = vmatprep.subr.bf16.mxu0 %v1103
    %1508 = vmatpush1.bf16.msra.mxu0 %v1102
    %1509 = vmatprep.subr.bf16.mxu0 %v1099
    %1510 = vmatpush1.bf16.msra.mxu0 %v1098
    %1511 = vmatprep.subr.bf16.mxu0 %v1095
    %1512 = vmatpush1.bf16.msra.mxu0 %v1094
    %1513 = vmatprep.subr.bf16.mxu0 %v1091
    %1514 = vmatpush1.bf16.msra.mxu0 %v1090
    %1515 = vmatprep.subr.bf16.mxu0 %v1087
    %1516 = vmatpush1.bf16.msra.mxu0 %v1086
    %1517 = vmatprep.subr.bf16.mxu0 %v1083
    %1518 = vmatpush1.bf16.msra.mxu0 %v1082
    %1519 = vmatprep.subr.bf16.mxu0 %v1079
    %1520 = vmatpush1.bf16.msra.mxu0 %v1078
    %1521 = vmatprep.subr.bf16.mxu0 %v1139
    %1522 = vmatpush2.bf16.msra.mxu0 %v1138
    %1523 = vmatprep.subr.bf16.mxu0 %v1135
    %1524 = vmatpush2.bf16.msra.mxu0 %v1134
    %1525 = vmatprep.subr.bf16.mxu0 %v1131
    %1526 = vmatpush2.bf16.msra.mxu0 %v1130
    %1527 = vmatprep.subr.bf16.mxu0 %v1127
    %1528 = vmatpush2.bf16.msra.mxu0 %v1126
    %1529 = vmatprep.subr.bf16.mxu0 %v1123
    %1530 = vmatpush2.bf16.msra.mxu0 %v1122
    %1531 = vmatprep.subr.bf16.mxu0 %v1119
    %1532 = vmatpush2.bf16.msra.mxu0 %v1118
    %1533 = vmatprep.subr.bf16.mxu0 %v1115
    %1534 = vmatpush2.bf16.msra.mxu0 %v1114
    %1535 = vmatprep.subr.bf16.mxu0 %v1111
    %1536 = vmatpush2.bf16.msra.mxu0 %v1110
    %1537 = vmatprep.mubr.bf16.mxu0 %v92
    %1538 = vmatmul.mubr.bf16.gmra.mxu0 %v91
    %v1539 = vpop.f32.mrf.mxu0
    %v1540 = vadd.f32 %v1497, %v1539
    %v1541 = vpop.f32.mrf.mxu0
    %v1542 = vadd.f32 %v1499, %v1541
    %v1543 = vpop.f32.mrf.mxu0
    %v1544 = vadd.f32 %v1501, %v1543
    %v1545 = vpop.f32.mrf.mxu0
    %v1546 = vadd.f32 %v1503, %v1545
    %1547 = vdwg.mxu0
    %1548 = vmatprep.subr.bf16.mxu0 %v1171
    %1549 = vmatpush1.bf16.msra.mxu0 %v1170
    %1550 = vmatprep.subr.bf16.mxu0 %v1167
    %1551 = vmatpush1.bf16.msra.mxu0 %v1166
    %1552 = vmatprep.subr.bf16.mxu0 %v1163
    %1553 = vmatpush1.bf16.msra.mxu0 %v1162
    %1554 = vmatprep.subr.bf16.mxu0 %v1159
    %1555 = vmatpush1.bf16.msra.mxu0 %v1158
    %1556 = vmatprep.subr.bf16.mxu0 %v1155
    %1557 = vmatpush1.bf16.msra.mxu0 %v1154
    %1558 = vmatprep.subr.bf16.mxu0 %v1151
    %1559 = vmatpush1.bf16.msra.mxu0 %v1150
    %1560 = vmatprep.subr.bf16.mxu0 %v1147
    %1561 = vmatpush1.bf16.msra.mxu0 %v1146
    %1562 = vmatprep.subr.bf16.mxu0 %v1143
    %1563 = vmatpush1.bf16.msra.mxu0 %v1142
    %1564 = vmatprep.subr.bf16.mxu0 %v1203
    %1565 = vmatpush2.bf16.msra.mxu0 %v1202
    %1566 = vmatprep.subr.bf16.mxu0 %v1199
    %1567 = vmatpush2.bf16.msra.mxu0 %v1198
    %1568 = vmatprep.subr.bf16.mxu0 %v1195
    %1569 = vmatpush2.bf16.msra.mxu0 %v1194
    %1570 = vmatprep.subr.bf16.mxu0 %v1191
    %1571 = vmatpush2.bf16.msra.mxu0 %v1190
    %1572 = vmatprep.subr.bf16.mxu0 %v1187
    %1573 = vmatpush2.bf16.msra.mxu0 %v1186
    %1574 = vmatprep.subr.bf16.mxu0 %v1183
    %1575 = vmatpush2.bf16.msra.mxu0 %v1182
    %1576 = vmatprep.subr.bf16.mxu0 %v1179
    %1577 = vmatpush2.bf16.msra.mxu0 %v1178
    %1578 = vmatprep.subr.bf16.mxu0 %v1175
    %1579 = vmatpush2.bf16.msra.mxu0 %v1174
    %1580 = vmatprep.mubr.bf16.mxu0 %v94
    %1581 = vmatmul.mubr.bf16.gmra.mxu0 %v93
    %v1582 = vpop.f32.mrf.mxu0
    %v1583 = vadd.f32 %v1540, %v1582
    %v1584 = vpop.f32.mrf.mxu0
    %v1585 = vadd.f32 %v1542, %v1584
    %v1586 = vpop.f32.mrf.mxu0
    %v1587 = vadd.f32 %v1544, %v1586
    %v1588 = vpop.f32.mrf.mxu0
    %v1589 = vadd.f32 %v1546, %v1588
    %1590 = vdwg.mxu0
    %1591 = vmatprep.subr.bf16.mxu0 %v1235
    %1592 = vmatpush1.bf16.msra.mxu0 %v1234
    %1593 = vmatprep.subr.bf16.mxu0 %v1231
    %1594 = vmatpush1.bf16.msra.mxu0 %v1230
    %1595 = vmatprep.subr.bf16.mxu0 %v1227
    %1596 = vmatpush1.bf16.msra.mxu0 %v1226
    %1597 = vmatprep.subr.bf16.mxu0 %v1223
    %1598 = vmatpush1.bf16.msra.mxu0 %v1222
    %1599 = vmatprep.subr.bf16.mxu0 %v1219
    %1600 = vmatpush1.bf16.msra.mxu0 %v1218
    %1601 = vmatprep.subr.bf16.mxu0 %v1215
    %1602 = vmatpush1.bf16.msra.mxu0 %v1214
    %1603 = vmatprep.subr.bf16.mxu0 %v1211
    %1604 = vmatpush1.bf16.msra.mxu0 %v1210
    %1605 = vmatprep.subr.bf16.mxu0 %v1207
    %1606 = vmatpush1.bf16.msra.mxu0 %v1206
    %1607 = vmatprep.subr.bf16.mxu0 0
    %1608 = vmatpush2.bf16.msra.mxu0 0
    %1609 = vmatprep.subr.bf16.mxu0 0
    %1610 = vmatpush2.bf16.msra.mxu0 0
    %1611 = vmatprep.subr.bf16.mxu0 0
    %1612 = vmatpush2.bf16.msra.mxu0 0
    %1613 = vmatprep.subr.bf16.mxu0 0
    %1614 = vmatpush2.bf16.msra.mxu0 0
    %1615 = vmatprep.subr.bf16.mxu0 0
    %1616 = vmatpush2.bf16.msra.mxu0 0
    %1617 = vmatprep.subr.bf16.mxu0 0
    %1618 = vmatpush2.bf16.msra.mxu0 0
    %1619 = vmatprep.subr.bf16.mxu0 0
    %1620 = vmatpush2.bf16.msra.mxu0 0
    %1621 = vmatprep.subr.bf16.mxu0 0
    %1622 = vmatpush2.bf16.msra.mxu0 0
    %1623 = vmatprep.mubr.bf16.mxu0 0
    %1624 = vmatmul.mubr.bf16.gmra.mxu0 %v95
    %v1625 = vpop.f32.mrf.mxu0
    %v1626 = vadd.f32 %v1583, %v1625
    %v1627 = vpop.f32.mrf.mxu0
    %v1628 = vadd.f32 %v1585, %v1627
    %v1629 = vpop.f32.mrf.mxu0
    %v1630 = vadd.f32 %v1587, %v1629
    %v1631 = vpop.f32.mrf.mxu0
    %v1632 = vadd.f32 %v1589, %v1631
    %1633 = vdwg.mxu0
    %1634 = vmatprep.subr.bf16.mxu0 %v1045
    %1635 = vmatpush1.bf16.msra.mxu0 %v1044
    %1636 = vmatprep.subr.bf16.mxu0 %v1041
    %1637 = vmatpush1.bf16.msra.mxu0 %v1040
    %1638 = vmatprep.subr.bf16.mxu0 %v1037
    %1639 = vmatpush1.bf16.msra.mxu0 %v1036
    %1640 = vmatprep.subr.bf16.mxu0 %v1033
    %1641 = vmatpush1.bf16.msra.mxu0 %v1032
    %1642 = vmatprep.subr.bf16.mxu0 %v1029
    %1643 = vmatpush1.bf16.msra.mxu0 %v1028
    %1644 = vmatprep.subr.bf16.mxu0 %v1025
    %1645 = vmatpush1.bf16.msra.mxu0 %v1024
    %1646 = vmatprep.subr.bf16.mxu0 %v1021
    %1647 = vmatpush1.bf16.msra.mxu0 %v1020
    %1648 = vmatprep.subr.bf16.mxu0 %v1017
    %1649 = vmatpush1.bf16.msra.mxu0 %v1016
    %1650 = vmatprep.subr.bf16.mxu0 %v1077
    %1651 = vmatpush2.bf16.msra.mxu0 %v1076
    %1652 = vmatprep.subr.bf16.mxu0 %v1073
    %1653 = vmatpush2.bf16.msra.mxu0 %v1072
    %1654 = vmatprep.subr.bf16.mxu0 %v1069
    %1655 = vmatpush2.bf16.msra.mxu0 %v1068
    %1656 = vmatprep.subr.bf16.mxu0 %v1065
    %1657 = vmatpush2.bf16.msra.mxu0 %v1064
    %1658 = vmatprep.subr.bf16.mxu0 %v1061
    %1659 = vmatpush2.bf16.msra.mxu0 %v1060
    %1660 = vmatprep.subr.bf16.mxu0 %v1057
    %1661 = vmatpush2.bf16.msra.mxu0 %v1056
    %1662 = vmatprep.subr.bf16.mxu0 %v1053
    %1663 = vmatpush2.bf16.msra.mxu0 %v1052
    %1664 = vmatprep.subr.bf16.mxu0 %v1049
    %1665 = vmatpush2.bf16.msra.mxu0 %v1048
    %1666 = vmatprep.mubr.bf16.mxu0 %v90
    %1667 = vmatmul.mubr.bf16.gmra.mxu0 %v89
    %v1668 = vpop.f32.mrf.mxu0
    %v1669 = vadd.f32 %v333, %v1668
    %v1670 = vpop.f32.mrf.mxu0
    %v1671 = vadd.f32 %v337, %v1670
    %v1672 = vpop.f32.mrf.mxu0
    %v1673 = vadd.f32 %v333, %v1672
    %v1674 = vpop.f32.mrf.mxu0
    %v1675 = vadd.f32 %v337, %v1674
    %1676 = vdwg.mxu0
    %1677 = vmatprep.subr.bf16.mxu0 %v1109
    %1678 = vmatpush1.bf16.msra.mxu0 %v1108
    %1679 = vmatprep.subr.bf16.mxu0 %v1105
    %1680 = vmatpush1.bf16.msra.mxu0 %v1104
    %1681 = vmatprep.subr.bf16.mxu0 %v1101
    %1682 = vmatpush1.bf16.msra.mxu0 %v1100
    %1683 = vmatprep.subr.bf16.mxu0 %v1097
    %1684 = vmatpush1.bf16.msra.mxu0 %v1096
    %1685 = vmatprep.subr.bf16.mxu0 %v1093
    %1686 = vmatpush1.bf16.msra.mxu0 %v1092
    %1687 = vmatprep.subr.bf16.mxu0 %v1089
    %1688 = vmatpush1.bf16.msra.mxu0 %v1088
    %1689 = vmatprep.subr.bf16.mxu0 %v1085
    %1690 = vmatpush1.bf16.msra.mxu0 %v1084
    %1691 = vmatprep.subr.bf16.mxu0 %v1081
    %1692 = vmatpush1.bf16.msra.mxu0 %v1080
    %1693 = vmatprep.subr.bf16.mxu0 %v1141
    %1694 = vmatpush2.bf16.msra.mxu0 %v1140
    %1695 = vmatprep.subr.bf16.mxu0 %v1137
    %1696 = vmatpush2.bf16.msra.mxu0 %v1136
    %1697 = vmatprep.subr.bf16.mxu0 %v1133
    %1698 = vmatpush2.bf16.msra.mxu0 %v1132
    %1699 = vmatprep.subr.bf16.mxu0 %v1129
    %1700 = vmatpush2.bf16.msra.mxu0 %v1128
    %1701 = vmatprep.subr.bf16.mxu0 %v1125
    %1702 = vmatpush2.bf16.msra.mxu0 %v1124
    %1703 = vmatprep.subr.bf16.mxu0 %v1121
    %1704 = vmatpush2.bf16.msra.mxu0 %v1120
    %1705 = vmatprep.subr.bf16.mxu0 %v1117
    %1706 = vmatpush2.bf16.msra.mxu0 %v1116
    %1707 = vmatprep.subr.bf16.mxu0 %v1113
    %1708 = vmatpush2.bf16.msra.mxu0 %v1112
    %1709 = vmatprep.mubr.bf16.mxu0 %v92
    %1710 = vmatmul.mubr.bf16.gmra.mxu0 %v91
    %v1711 = vpop.f32.mrf.mxu0
    %v1712 = vadd.f32 %v1669, %v1711
    %v1713 = vpop.f32.mrf.mxu0
    %v1714 = vadd.f32 %v1671, %v1713
    %v1715 = vpop.f32.mrf.mxu0
    %v1716 = vadd.f32 %v1673, %v1715
    %v1717 = vpop.f32.mrf.mxu0
    %v1718 = vadd.f32 %v1675, %v1717
    %1719 = vdwg.mxu0
    %1720 = vmatprep.subr.bf16.mxu0 %v1173
    %1721 = vmatpush1.bf16.msra.mxu0 %v1172
    %1722 = vmatprep.subr.bf16.mxu0 %v1169
    %1723 = vmatpush1.bf16.msra.mxu0 %v1168
    %1724 = vmatprep.subr.bf16.mxu0 %v1165
    %1725 = vmatpush1.bf16.msra.mxu0 %v1164
    %1726 = vmatprep.subr.bf16.mxu0 %v1161
    %1727 = vmatpush1.bf16.msra.mxu0 %v1160
    %1728 = vmatprep.subr.bf16.mxu0 %v1157
    %1729 = vmatpush1.bf16.msra.mxu0 %v1156
    %1730 = vmatprep.subr.bf16.mxu0 %v1153
    %1731 = vmatpush1.bf16.msra.mxu0 %v1152
    %1732 = vmatprep.subr.bf16.mxu0 %v1149
    %1733 = vmatpush1.bf16.msra.mxu0 %v1148
    %1734 = vmatprep.subr.bf16.mxu0 %v1145
    %1735 = vmatpush1.bf16.msra.mxu0 %v1144
    %1736 = vmatprep.subr.bf16.mxu0 %v1205
    %1737 = vmatpush2.bf16.msra.mxu0 %v1204
    %1738 = vmatprep.subr.bf16.mxu0 %v1201
    %1739 = vmatpush2.bf16.msra.mxu0 %v1200
    %1740 = vmatprep.subr.bf16.mxu0 %v1197
    %1741 = vmatpush2.bf16.msra.mxu0 %v1196
    %1742 = vmatprep.subr.bf16.mxu0 %v1193
    %1743 = vmatpush2.bf16.msra.mxu0 %v1192
    %1744 = vmatprep.subr.bf16.mxu0 %v1189
    %1745 = vmatpush2.bf16.msra.mxu0 %v1188
    %1746 = vmatprep.subr.bf16.mxu0 %v1185
    %1747 = vmatpush2.bf16.msra.mxu0 %v1184
    %1748 = vmatprep.subr.bf16.mxu0 %v1181
    %1749 = vmatpush2.bf16.msra.mxu0 %v1180
    %1750 = vmatprep.subr.bf16.mxu0 %v1177
    %1751 = vmatpush2.bf16.msra.mxu0 %v1176
    %1752 = vmatprep.mubr.bf16.mxu0 %v94
    %1753 = vmatmul.mubr.bf16.gmra.mxu0 %v93
    %v1754 = vpop.f32.mrf.mxu0
    %v1755 = vadd.f32 %v1712, %v1754
    %v1756 = vpop.f32.mrf.mxu0
    %v1757 = vadd.f32 %v1714, %v1756
    %v1758 = vpop.f32.mrf.mxu0
    %v1759 = vadd.f32 %v1716, %v1758
    %v1760 = vpop.f32.mrf.mxu0
    %v1761 = vadd.f32 %v1718, %v1760
    %1762 = vdwg.mxu0
    %1763 = vmatprep.subr.bf16.mxu0 %v1237
    %1764 = vmatpush1.bf16.msra.mxu0 %v1236
    %1765 = vmatprep.subr.bf16.mxu0 %v1233
    %1766 = vmatpush1.bf16.msra.mxu0 %v1232
    %1767 = vmatprep.subr.bf16.mxu0 %v1229
    %1768 = vmatpush1.bf16.msra.mxu0 %v1228
    %1769 = vmatprep.subr.bf16.mxu0 %v1225
    %1770 = vmatpush1.bf16.msra.mxu0 %v1224
    %1771 = vmatprep.subr.bf16.mxu0 %v1221
    %1772 = vmatpush1.bf16.msra.mxu0 %v1220
    %1773 = vmatprep.subr.bf16.mxu0 %v1217
    %1774 = vmatpush1.bf16.msra.mxu0 %v1216
    %1775 = vmatprep.subr.bf16.mxu0 %v1213
    %1776 = vmatpush1.bf16.msra.mxu0 %v1212
    %1777 = vmatprep.subr.bf16.mxu0 %v1209
    %1778 = vmatpush1.bf16.msra.mxu0 %v1208
    %1779 = vmatprep.subr.bf16.mxu0 0
    %1780 = vmatpush2.bf16.msra.mxu0 0
    %1781 = vmatprep.subr.bf16.mxu0 0
    %1782 = vmatpush2.bf16.msra.mxu0 0
    %1783 = vmatprep.subr.bf16.mxu0 0
    %1784 = vmatpush2.bf16.msra.mxu0 0
    %1785 = vmatprep.subr.bf16.mxu0 0
    %1786 = vmatpush2.bf16.msra.mxu0 0
    %1787 = vmatprep.subr.bf16.mxu0 0
    %1788 = vmatpush2.bf16.msra.mxu0 0
    %1789 = vmatprep.subr.bf16.mxu0 0
    %1790 = vmatpush2.bf16.msra.mxu0 0
    %1791 = vmatprep.subr.bf16.mxu0 0
    %1792 = vmatpush2.bf16.msra.mxu0 0
    %1793 = vmatprep.subr.bf16.mxu0 0
    %1794 = vmatpush2.bf16.msra.mxu0 0
    %1795 = vmatprep.mubr.bf16.mxu0 0
    %1796 = vmatmul.mubr.bf16.gmra.mxu0 %v95
    %v1797 = vpop.f32.mrf.mxu0
    %v1798 = vadd.f32 %v1755, %v1797
    %v1799 = vpop.f32.mrf.mxu0
    %v1800 = vadd.f32 %v1757, %v1799
    %v1801 = vpop.f32.mrf.mxu0
    %v1802 = vadd.f32 %v1759, %v1801
    %v1803 = vpop.f32.mrf.mxu0
    %v1804 = vadd.f32 %v1761, %v1803
    %1805 = vdwg.mxu0
    %v1806 = vpack.c.bf16 %v1630, %v1626
    %v1807 = vpack.c.bf16 %v1632, %v1628
    %v1808 = vpack.c.bf16 %v1802, %v1798
    %v1809 = vpack.c.bf16 %v1804, %v1800
    %v1810 = vld [vmem:[#allocation8] sm:$0xff]
    %v1811 = vld [vmem:[#allocation8 + $0x8] sm:$0xff]
    %v1812 = vld [vmem:[#allocation8 + $0x10] sm:$0xff]
    %v1813 = vld [vmem:[#allocation8 + $0x18] sm:$0xf]
    %v1814 = vld [vmem:[#allocation8 + $0x1c] sm:$0xff]
    %v1815 = vld [vmem:[#allocation8 + $0x24] sm:$0xff]
    %v1816 = vld [vmem:[#allocation8 + $0x2c] sm:$0xff]
    %v1817 = vld [vmem:[#allocation8 + $0x34] sm:$0xf]
    %v1818 = vld [vmem:[#allocation8 + $0x38] sm:$0xff]
    %v1819 = vld [vmem:[#allocation8 + $0x40] sm:$0xff]
    %v1820 = vld [vmem:[#allocation8 + $0x48] sm:$0xff]
    %v1821 = vld [vmem:[#allocation8 + $0x50] sm:$0xf]
    %v1822 = vld [vmem:[#allocation8 + $0x54] sm:$0xff]
    %v1823 = vld [vmem:[#allocation8 + $0x5c] sm:$0xff]
    %v1824 = vld [vmem:[#allocation8 + $0x64] sm:$0xff]
    %v1825 = vld [vmem:[#allocation8 + $0x6c] sm:$0xf]
    %v1826 = vld [vmem:[#allocation8 + $0x70] sm:$0xff]
    %v1827 = vld [vmem:[#allocation8 + $0x78] sm:$0xff]
    %v1828 = vld [vmem:[#allocation8 + $0x80] sm:$0xff]
    %v1829 = vld [vmem:[#allocation8 + $0x88] sm:$0xf]
    %v1830 = vld [vmem:[#allocation8 + $0x8c] sm:$0xff]
    %v1831 = vld [vmem:[#allocation8 + $0x94] sm:$0xff]
    %v1832 = vld [vmem:[#allocation8 + $0x9c] sm:$0xff]
    %v1833 = vld [vmem:[#allocation8 + $0xa4] sm:$0xf]
    %v1834 = vld [vmem:[#allocation8 + $0xa8] sm:$0xff]
    %v1835 = vld [vmem:[#allocation8 + $0xb0] sm:$0xff]
    %v1836 = vld [vmem:[#allocation8 + $0xb8] sm:$0xff]
    %v1837 = vld [vmem:[#allocation8 + $0xc0] sm:$0xf]
    %v1838 = vld [vmem:[#allocation8 + $0xc4] sm:$0xff]
    %v1839 = vld [vmem:[#allocation8 + $0xcc] sm:$0xff]
    %v1840 = vld [vmem:[#allocation8 + $0xd4] sm:$0xff]
    %v1841 = vld [vmem:[#allocation8 + $0xdc] sm:$0xf]
    %v1842 = vld [vmem:[#allocation8 + $0xe0] sm:$0xff]
    %v1843 = vld [vmem:[#allocation8 + $0xe8] sm:$0xff]
    %v1844 = vld [vmem:[#allocation8 + $0xf0] sm:$0xff]
    %v1845 = vld [vmem:[#allocation8 + $0xf8] sm:$0xf]
    %v1846 = vld [vmem:[#allocation8 + $0xfc] sm:$0xff]
    %v1847 = vld [vmem:[#allocation8 + $0x104] sm:$0xff]
    %v1848 = vld [vmem:[#allocation8 + $0x10c] sm:$0xff]
    %v1849 = vld [vmem:[#allocation8 + $0x114] sm:$0xf]
    %v1850 = vld [vmem:[#allocation8 + $0x118] sm:$0xff]
    %v1851 = vld [vmem:[#allocation8 + $0x120] sm:$0xff]
    %v1852 = vld [vmem:[#allocation8 + $0x128] sm:$0xff]
    %v1853 = vld [vmem:[#allocation8 + $0x130] sm:$0xf]
    %v1854 = vld [vmem:[#allocation8 + $0x134] sm:$0xff]
    %v1855 = vld [vmem:[#allocation8 + $0x13c] sm:$0xff]
    %v1856 = vld [vmem:[#allocation8 + $0x144] sm:$0xff]
    %v1857 = vld [vmem:[#allocation8 + $0x14c] sm:$0xf]
    %v1858 = vld [vmem:[#allocation8 + $0x150] sm:$0xff]
    %v1859 = vld [vmem:[#allocation8 + $0x158] sm:$0xff]
    %v1860 = vld [vmem:[#allocation8 + $0x160] sm:$0xff]
    %v1861 = vld [vmem:[#allocation8 + $0x168] sm:$0xf]
    %v1862 = vld [vmem:[#allocation8 + $0x16c] sm:$0xff]
    %v1863 = vld [vmem:[#allocation8 + $0x174] sm:$0xff]
    %v1864 = vld [vmem:[#allocation8 + $0x17c] sm:$0xff]
    %v1865 = vld [vmem:[#allocation8 + $0x184] sm:$0xf]
    %v1866 = vld [vmem:[#allocation8 + $0x188] sm:$0xff]
    %v1867 = vld [vmem:[#allocation8 + $0x190] sm:$0xff]
    %v1868 = vld [vmem:[#allocation8 + $0x198] sm:$0xff]
    %v1869 = vld [vmem:[#allocation8 + $0x1a0] sm:$0xf]
    %v1870 = vld [vmem:[#allocation8 + $0x1a4] sm:$0xff]
    %v1871 = vld [vmem:[#allocation8 + $0x1ac] sm:$0xff]
    %v1872 = vld [vmem:[#allocation8 + $0x1b4] sm:$0xff]
    %v1873 = vld [vmem:[#allocation8 + $0x1bc] sm:$0xf]
    %v1874 = vld [vmem:[#allocation8 + $0x1c0] sm:$0xff]
    %v1875 = vld [vmem:[#allocation8 + $0x1c8] sm:$0xff]
    %v1876 = vld [vmem:[#allocation8 + $0x1d0] sm:$0xff]
    %v1877 = vld [vmem:[#allocation8 + $0x1d8] sm:$0xf]
    %v1878 = vld [vmem:[#allocation8 + $0x1dc] sm:$0xff]
    %v1879 = vld [vmem:[#allocation8 + $0x1e4] sm:$0xff]
    %v1880 = vld [vmem:[#allocation8 + $0x1ec] sm:$0xff]
    %v1881 = vld [vmem:[#allocation8 + $0x1f4] sm:$0xf]
    %v1882 = vld [vmem:[#allocation8 + $0x1f8] sm:$0xff]
    %v1883 = vld [vmem:[#allocation8 + $0x200] sm:$0xff]
    %v1884 = vld [vmem:[#allocation8 + $0x208] sm:$0xff]
    %v1885 = vld [vmem:[#allocation8 + $0x210] sm:$0xf]
    %v1886 = vld [vmem:[#allocation8 + $0x214] sm:$0xff]
    %v1887 = vld [vmem:[#allocation8 + $0x21c] sm:$0xff]
    %v1888 = vld [vmem:[#allocation8 + $0x224] sm:$0xff]
    %v1889 = vld [vmem:[#allocation8 + $0x22c] sm:$0xf]
    %v1890 = vld [vmem:[#allocation8 + $0x230] sm:$0xff]
    %v1891 = vld [vmem:[#allocation8 + $0x238] sm:$0xff]
    %v1892 = vld [vmem:[#allocation8 + $0x240] sm:$0xff]
    %v1893 = vld [vmem:[#allocation8 + $0x248] sm:$0xf]
    %v1894 = vld [vmem:[#allocation8 + $0x24c] sm:$0xff]
    %v1895 = vld [vmem:[#allocation8 + $0x254] sm:$0xff]
    %v1896 = vld [vmem:[#allocation8 + $0x25c] sm:$0xff]
    %v1897 = vld [vmem:[#allocation8 + $0x264] sm:$0xf]
    %v1898 = vld [vmem:[#allocation8 + $0x268] sm:$0xff]
    %v1899 = vld [vmem:[#allocation8 + $0x270] sm:$0xff]
    %v1900 = vld [vmem:[#allocation8 + $0x278] sm:$0xff]
    %v1901 = vld [vmem:[#allocation8 + $0x280] sm:$0xf]
    %v1902 = vld [vmem:[#allocation8 + $0x284] sm:$0xff]
    %v1903 = vld [vmem:[#allocation8 + $0x28c] sm:$0xff]
    %v1904 = vld [vmem:[#allocation8 + $0x294] sm:$0xff]
    %v1905 = vld [vmem:[#allocation8 + $0x29c] sm:$0xf]
    %v1906 = vld [vmem:[#allocation8 + $0x2a0] sm:$0xff]
    %v1907 = vld [vmem:[#allocation8 + $0x2a8] sm:$0xff]
    %v1908 = vld [vmem:[#allocation8 + $0x2b0] sm:$0xff]
    %v1909 = vld [vmem:[#allocation8 + $0x2b8] sm:$0xf]
    %v1910 = vld [vmem:[#allocation8 + $0x2bc] sm:$0xff]
    %v1911 = vld [vmem:[#allocation8 + $0x2c4] sm:$0xff]
    %v1912 = vld [vmem:[#allocation8 + $0x2cc] sm:$0xff]
    %v1913 = vld [vmem:[#allocation8 + $0x2d4] sm:$0xf]
    %v1914 = vld [vmem:[#allocation8 + $0x2d8] sm:$0xff]
    %v1915 = vld [vmem:[#allocation8 + $0x2e0] sm:$0xff]
    %v1916 = vld [vmem:[#allocation8 + $0x2e8] sm:$0xff]
    %v1917 = vld [vmem:[#allocation8 + $0x2f0] sm:$0xf]
    %v1918 = vld [vmem:[#allocation8 + $0x2f4] sm:$0xff]
    %v1919 = vld [vmem:[#allocation8 + $0x2fc] sm:$0xff]
    %v1920 = vld [vmem:[#allocation8 + $0x304] sm:$0xff]
    %v1921 = vld [vmem:[#allocation8 + $0x30c] sm:$0xf]
    %v1922 = vld [vmem:[#allocation8 + $0x310] sm:$0xff]
    %v1923 = vld [vmem:[#allocation8 + $0x318] sm:$0xff]
    %v1924 = vld [vmem:[#allocation8 + $0x320] sm:$0xff]
    %v1925 = vld [vmem:[#allocation8 + $0x328] sm:$0xf]
    %v1926 = vld [vmem:[#allocation8 + $0x32c] sm:$0xff]
    %v1927 = vld [vmem:[#allocation8 + $0x334] sm:$0xff]
    %v1928 = vld [vmem:[#allocation8 + $0x33c] sm:$0xff]
    %v1929 = vld [vmem:[#allocation8 + $0x344] sm:$0xf]
    %v1930 = vld [vmem:[#allocation8 + $0x348] sm:$0xff]
    %v1931 = vld [vmem:[#allocation8 + $0x350] sm:$0xff]
    %v1932 = vld [vmem:[#allocation8 + $0x358] sm:$0xff]
    %v1933 = vld [vmem:[#allocation8 + $0x360] sm:$0xf]
    %v1934 = vld [vmem:[#allocation8 + $0x364] sm:$0xff]
    %v1935 = vld [vmem:[#allocation8 + $0x36c] sm:$0xff]
    %v1936 = vld [vmem:[#allocation8 + $0x374] sm:$0xff]
    %v1937 = vld [vmem:[#allocation8 + $0x37c] sm:$0xf]
    %v1938 = vld [vmem:[#allocation8 + $0x380] sm:$0xff]
    %v1939 = vld [vmem:[#allocation8 + $0x388] sm:$0xff]
    %v1940 = vld [vmem:[#allocation8 + $0x390] sm:$0xff]
    %v1941 = vld [vmem:[#allocation8 + $0x398] sm:$0xf]
    %v1942 = vld [vmem:[#allocation8 + $0x39c] sm:$0xff]
    %v1943 = vld [vmem:[#allocation8 + $0x3a4] sm:$0xff]
    %v1944 = vld [vmem:[#allocation8 + $0x3ac] sm:$0xff]
    %v1945 = vld [vmem:[#allocation8 + $0x3b4] sm:$0xf]
    %v1946 = vld [vmem:[#allocation8 + $0x3b8] sm:$0xff]
    %v1947 = vld [vmem:[#allocation8 + $0x3c0] sm:$0xff]
    %v1948 = vld [vmem:[#allocation8 + $0x3c8] sm:$0xff]
    %v1949 = vld [vmem:[#allocation8 + $0x3d0] sm:$0xf]
    %v1950 = vld [vmem:[#allocation8 + $0x3d4] sm:$0xff]
    %v1951 = vld [vmem:[#allocation8 + $0x3dc] sm:$0xff]
    %v1952 = vld [vmem:[#allocation8 + $0x3e4] sm:$0xff]
    %v1953 = vld [vmem:[#allocation8 + $0x3ec] sm:$0xf]
    %v1954 = vld [vmem:[#allocation8 + $0x3f0] sm:$0xff]
    %v1955 = vld [vmem:[#allocation8 + $0x3f8] sm:$0xff]
    %v1956 = vld [vmem:[#allocation8 + $0x400] sm:$0xff]
    %v1957 = vld [vmem:[#allocation8 + $0x408] sm:$0xf]
    %v1958 = vld [vmem:[#allocation8 + $0x40c] sm:$0xff]
    %v1959 = vld [vmem:[#allocation8 + $0x414] sm:$0xff]
    %v1960 = vld [vmem:[#allocation8 + $0x41c] sm:$0xff]
    %v1961 = vld [vmem:[#allocation8 + $0x424] sm:$0xf]
    %v1962 = vld [vmem:[#allocation8 + $0x428] sm:$0xff]
    %v1963 = vld [vmem:[#allocation8 + $0x430] sm:$0xff]
    %v1964 = vld [vmem:[#allocation8 + $0x438] sm:$0xff]
    %v1965 = vld [vmem:[#allocation8 + $0x440] sm:$0xf]
    %v1966 = vld [vmem:[#allocation8 + $0x444] sm:$0xff]
    %v1967 = vld [vmem:[#allocation8 + $0x44c] sm:$0xff]
    %v1968 = vld [vmem:[#allocation8 + $0x454] sm:$0xff]
    %v1969 = vld [vmem:[#allocation8 + $0x45c] sm:$0xf]
    %v1970 = vld [vmem:[#allocation8 + $0x460] sm:$0xff]
    %v1971 = vld [vmem:[#allocation8 + $0x468] sm:$0xff]
    %v1972 = vld [vmem:[#allocation8 + $0x470] sm:$0xff]
    %v1973 = vld [vmem:[#allocation8 + $0x478] sm:$0xf]
    %v1974 = vld [vmem:[#allocation8 + $0x47c] sm:$0xff]
    %v1975 = vld [vmem:[#allocation8 + $0x484] sm:$0xff]
    %v1976 = vld [vmem:[#allocation8 + $0x48c] sm:$0xff]
    %v1977 = vld [vmem:[#allocation8 + $0x494] sm:$0xf]
    %v1978 = vld [vmem:[#allocation8 + $0x498] sm:$0xff]
    %v1979 = vld [vmem:[#allocation8 + $0x4a0] sm:$0xff]
    %v1980 = vld [vmem:[#allocation8 + $0x4a8] sm:$0xff]
    %v1981 = vld [vmem:[#allocation8 + $0x4b0] sm:$0xf]
    %v1982 = vld [vmem:[#allocation8 + $0x4b4] sm:$0xff]
    %v1983 = vld [vmem:[#allocation8 + $0x4bc] sm:$0xff]
    %v1984 = vld [vmem:[#allocation8 + $0x4c4] sm:$0xff]
    %v1985 = vld [vmem:[#allocation8 + $0x4cc] sm:$0xf]
    %v1986 = vld [vmem:[#allocation8 + $0x4d0] sm:$0xff]
    %v1987 = vld [vmem:[#allocation8 + $0x4d8] sm:$0xff]
    %v1988 = vld [vmem:[#allocation8 + $0x4e0] sm:$0xff]
    %v1989 = vld [vmem:[#allocation8 + $0x4e8] sm:$0xf]
    %v1990 = vld [vmem:[#allocation8 + $0x4ec] sm:$0xff]
    %v1991 = vld [vmem:[#allocation8 + $0x4f4] sm:$0xff]
    %v1992 = vld [vmem:[#allocation8 + $0x4fc] sm:$0xff]
    %v1993 = vld [vmem:[#allocation8 + $0x504] sm:$0xf]
    %v1994 = vld [vmem:[#allocation8 + $0x508] sm:$0xff]
    %v1995 = vld [vmem:[#allocation8 + $0x510] sm:$0xff]
    %v1996 = vld [vmem:[#allocation8 + $0x518] sm:$0xff]
    %v1997 = vld [vmem:[#allocation8 + $0x520] sm:$0xf]
    %v1998 = vld [vmem:[#allocation8 + $0x524] sm:$0xff]
    %v1999 = vld [vmem:[#allocation8 + $0x52c] sm:$0xff]
    %v2000 = vld [vmem:[#allocation8 + $0x534] sm:$0xff]
    %v2001 = vld [vmem:[#allocation8 + $0x53c] sm:$0xf]
    %v2002 = vld [vmem:[#allocation8 + $0x540] sm:$0xff]
    %v2003 = vld [vmem:[#allocation8 + $0x548] sm:$0xff]
    %v2004 = vld [vmem:[#allocation8 + $0x550] sm:$0xff]
    %v2005 = vld [vmem:[#allocation8 + $0x558] sm:$0xf]
    %v2006 = vld [vmem:[#allocation8 + $0x55c] sm:$0xff]
    %v2007 = vld [vmem:[#allocation8 + $0x564] sm:$0xff]
    %v2008 = vld [vmem:[#allocation8 + $0x56c] sm:$0xff]
    %v2009 = vld [vmem:[#allocation8 + $0x574] sm:$0xf]
    %v2010 = vld [vmem:[#allocation8 + $0x578] sm:$0xff]
    %v2011 = vld [vmem:[#allocation8 + $0x580] sm:$0xff]
    %v2012 = vld [vmem:[#allocation8 + $0x588] sm:$0xff]
    %v2013 = vld [vmem:[#allocation8 + $0x590] sm:$0xf]
    %v2014 = vld [vmem:[#allocation8 + $0x594] sm:$0xff]
    %v2015 = vld [vmem:[#allocation8 + $0x59c] sm:$0xff]
    %v2016 = vld [vmem:[#allocation8 + $0x5a4] sm:$0xff]
    %v2017 = vld [vmem:[#allocation8 + $0x5ac] sm:$0xf]
    %v2018 = vld [vmem:[#allocation8 + $0x5b0] sm:$0xff]
    %v2019 = vld [vmem:[#allocation8 + $0x5b8] sm:$0xff]
    %v2020 = vld [vmem:[#allocation8 + $0x5c0] sm:$0xff]
    %v2021 = vld [vmem:[#allocation8 + $0x5c8] sm:$0xf]
    %v2022 = vld [vmem:[#allocation8 + $0x5cc] sm:$0xff]
    %v2023 = vld [vmem:[#allocation8 + $0x5d4] sm:$0xff]
    %v2024 = vld [vmem:[#allocation8 + $0x5dc] sm:$0xff]
    %v2025 = vld [vmem:[#allocation8 + $0x5e4] sm:$0xf]
    %v2026 = vld [vmem:[#allocation8 + $0x5e8] sm:$0xff]
    %v2027 = vld [vmem:[#allocation8 + $0x5f0] sm:$0xff]
    %v2028 = vld [vmem:[#allocation8 + $0x5f8] sm:$0xff]
    %v2029 = vld [vmem:[#allocation8 + $0x600] sm:$0xf]
    %v2030 = vld [vmem:[#allocation8 + $0x604] sm:$0xff]
    %v2031 = vld [vmem:[#allocation8 + $0x60c] sm:$0xff]
    %v2032 = vld [vmem:[#allocation8 + $0x614] sm:$0xff]
    %v2033 = vld [vmem:[#allocation8 + $0x61c] sm:$0xf]
    %v2034 = vld [vmem:[#allocation8 + $0x620] sm:$0xff]
    %v2035 = vld [vmem:[#allocation8 + $0x628] sm:$0xff]
    %v2036 = vld [vmem:[#allocation8 + $0x630] sm:$0xff]
    %v2037 = vld [vmem:[#allocation8 + $0x638] sm:$0xf]
    %v2038 = vld [vmem:[#allocation8 + $0x63c] sm:$0xff]
    %v2039 = vld [vmem:[#allocation8 + $0x644] sm:$0xff]
    %v2040 = vld [vmem:[#allocation8 + $0x64c] sm:$0xff]
    %v2041 = vld [vmem:[#allocation8 + $0x654] sm:$0xf]
    %v2042 = vld [vmem:[#allocation8 + $0x658] sm:$0xff]
    %v2043 = vld [vmem:[#allocation8 + $0x660] sm:$0xff]
    %v2044 = vld [vmem:[#allocation8 + $0x668] sm:$0xff]
    %v2045 = vld [vmem:[#allocation8 + $0x670] sm:$0xf]
    %v2046 = vld [vmem:[#allocation8 + $0x674] sm:$0xff]
    %v2047 = vld [vmem:[#allocation8 + $0x67c] sm:$0xff]
    %v2048 = vld [vmem:[#allocation8 + $0x684] sm:$0xff]
    %v2049 = vld [vmem:[#allocation8 + $0x68c] sm:$0xf]
    %v2050 = vld [vmem:[#allocation8 + $0x690] sm:$0xff]
    %v2051 = vld [vmem:[#allocation8 + $0x698] sm:$0xff]
    %v2052 = vld [vmem:[#allocation8 + $0x6a0] sm:$0xff]
    %v2053 = vld [vmem:[#allocation8 + $0x6a8] sm:$0xf]
    %v2054 = vld [vmem:[#allocation8 + $0x6ac] sm:$0xff]
    %v2055 = vld [vmem:[#allocation8 + $0x6b4] sm:$0xff]
    %v2056 = vld [vmem:[#allocation8 + $0x6bc] sm:$0xff]
    %v2057 = vld [vmem:[#allocation8 + $0x6c4] sm:$0xf]
    %v2058 = vld [vmem:[#allocation8 + $0x6c8] sm:$0xff]
    %v2059 = vld [vmem:[#allocation8 + $0x6d0] sm:$0xff]
    %v2060 = vld [vmem:[#allocation8 + $0x6d8] sm:$0xff]
    %v2061 = vld [vmem:[#allocation8 + $0x6e0] sm:$0xf]
    %v2062 = vld [vmem:[#allocation8 + $0x6e4] sm:$0xff]
    %v2063 = vld [vmem:[#allocation8 + $0x6ec] sm:$0xff]
    %v2064 = vld [vmem:[#allocation8 + $0x6f4] sm:$0xff]
    %v2065 = vld [vmem:[#allocation8 + $0x6fc] sm:$0xf]
    %v2066 = vld [vmem:[%s4] sm:$0xff]
    %v2068 = vlaneseq
    %v2069 = vshrl.u32 %v2068, 7
    %v2070 = vsub.s32 0, %v2069
    %v2071 = vrot.slane %v2066, %v2070
    %v2072 = vlaneseq
    %v2073 = vshrl.u32 %v2072, 7
    %v2074 = vsub.s32 1, %v2073
    %v2075 = vrot.slane %v2066, %v2074
    %v2076 = vlaneseq
    %v2077 = vshrl.u32 %v2076, 7
    %v2078 = vsub.s32 2, %v2077
    %v2079 = vrot.slane %v2066, %v2078
    %v2080 = vlaneseq
    %v2081 = vshrl.u32 %v2080, 7
    %v2082 = vsub.s32 3, %v2081
    %v2083 = vrot.slane %v2066, %v2082
    %v2084 = vlaneseq
    %v2085 = vshrl.u32 %v2084, 7
    %v2086 = vsub.s32 4, %v2085
    %v2087 = vrot.slane %v2066, %v2086
    %v2088 = vlaneseq
    %v2089 = vshrl.u32 %v2088, 7
    %v2090 = vsub.s32 5, %v2089
    %v2091 = vrot.slane %v2066, %v2090
    %v2092 = vlaneseq
    %v2093 = vshrl.u32 %v2092, 7
    %v2094 = vsub.s32 6, %v2093
    %v2095 = vrot.slane %v2066, %v2094
    %v2359 = vunpack.c.l.b16 %v1810
    %v2360 = vunpack.c.h.b16 %v1810
    %v2361 = vunpack.c.l.b16 %v1811
    %v2362 = vunpack.c.h.b16 %v1811
    %v2363 = vunpack.c.l.b16 %v1812
    %v2364 = vunpack.c.h.b16 %v1812
    %v2365 = vunpack.c.l.b16 %v1813
    %v2366 = vunpack.c.l.b16 %v1814
    %v2367 = vunpack.c.h.b16 %v1814
    %v2368 = vunpack.c.l.b16 %v1815
    %v2369 = vunpack.c.h.b16 %v1815
    %v2370 = vunpack.c.l.b16 %v1816
    %v2371 = vunpack.c.h.b16 %v1816
    %v2372 = vunpack.c.l.b16 %v1817
    %v2373 = vunpack.c.l.b16 %v1818
    %v2374 = vunpack.c.h.b16 %v1818
    %v2375 = vunpack.c.l.b16 %v1819
    %v2376 = vunpack.c.h.b16 %v1819
    %v2377 = vunpack.c.l.b16 %v1820
    %v2378 = vunpack.c.h.b16 %v1820
    %v2379 = vunpack.c.l.b16 %v1821
    %v2380 = vunpack.c.l.b16 %v1822
    %v2381 = vunpack.c.h.b16 %v1822
    %v2382 = vunpack.c.l.b16 %v1823
    %v2383 = vunpack.c.h.b16 %v1823
    %v2384 = vunpack.c.l.b16 %v1824
    %v2385 = vunpack.c.h.b16 %v1824
    %v2386 = vunpack.c.l.b16 %v1825
    %v2387 = vunpack.c.l.b16 %v1826
    %v2388 = vunpack.c.h.b16 %v1826
    %v2389 = vunpack.c.l.b16 %v1827
    %v2390 = vunpack.c.h.b16 %v1827
    %v2391 = vunpack.c.l.b16 %v1828
    %v2392 = vunpack.c.h.b16 %v1828
    %v2393 = vunpack.c.l.b16 %v1829
    %v2394 = vunpack.c.l.b16 %v1830
    %v2395 = vunpack.c.h.b16 %v1830
    %v2396 = vunpack.c.l.b16 %v1831
    %v2397 = vunpack.c.h.b16 %v1831
    %v2398 = vunpack.c.l.b16 %v1832
    %v2399 = vunpack.c.h.b16 %v1832
    %v2400 = vunpack.c.l.b16 %v1833
    %v2401 = vunpack.c.l.b16 %v1834
    %v2402 = vunpack.c.h.b16 %v1834
    %v2403 = vunpack.c.l.b16 %v1835
    %v2404 = vunpack.c.h.b16 %v1835
    %v2405 = vunpack.c.l.b16 %v1836
    %v2406 = vunpack.c.h.b16 %v1836
    %v2407 = vunpack.c.l.b16 %v1837
    %v2408 = vunpack.c.l.b16 %v1838
    %v2409 = vunpack.c.h.b16 %v1838
    %v2410 = vunpack.c.l.b16 %v1839
    %v2411 = vunpack.c.h.b16 %v1839
    %v2412 = vunpack.c.l.b16 %v1840
    %v2413 = vunpack.c.h.b16 %v1840
    %v2414 = vunpack.c.l.b16 %v1841
    %v2415 = vunpack.c.l.b16 %v1842
    %v2416 = vunpack.c.h.b16 %v1842
    %v2417 = vunpack.c.l.b16 %v1843
    %v2418 = vunpack.c.h.b16 %v1843
    %v2419 = vunpack.c.l.b16 %v1844
    %v2420 = vunpack.c.h.b16 %v1844
    %v2421 = vunpack.c.l.b16 %v1845
    %v2422 = vunpack.c.l.b16 %v1846
    %v2423 = vunpack.c.h.b16 %v1846
    %v2424 = vunpack.c.l.b16 %v1847
    %v2425 = vunpack.c.h.b16 %v1847
    %v2426 = vunpack.c.l.b16 %v1848
    %v2427 = vunpack.c.h.b16 %v1848
    %v2428 = vunpack.c.l.b16 %v1849
    %v2429 = vunpack.c.l.b16 %v1850
    %v2430 = vunpack.c.h.b16 %v1850
    %v2431 = vunpack.c.l.b16 %v1851
    %v2432 = vunpack.c.h.b16 %v1851
    %v2433 = vunpack.c.l.b16 %v1852
    %v2434 = vunpack.c.h.b16 %v1852
    %v2435 = vunpack.c.l.b16 %v1853
    %v2436 = vunpack.c.l.b16 %v1854
    %v2437 = vunpack.c.h.b16 %v1854
    %v2438 = vunpack.c.l.b16 %v1855
    %v2439 = vunpack.c.h.b16 %v1855
    %v2440 = vunpack.c.l.b16 %v1856
    %v2441 = vunpack.c.h.b16 %v1856
    %v2442 = vunpack.c.l.b16 %v1857
    %v2443 = vunpack.c.l.b16 %v1858
    %v2444 = vunpack.c.h.b16 %v1858
    %v2445 = vunpack.c.l.b16 %v1859
    %v2446 = vunpack.c.h.b16 %v1859
    %v2447 = vunpack.c.l.b16 %v1860
    %v2448 = vunpack.c.h.b16 %v1860
    %v2449 = vunpack.c.l.b16 %v1861
    %v2450 = vunpack.c.l.b16 %v1862
    %v2451 = vunpack.c.h.b16 %v1862
    %v2452 = vunpack.c.l.b16 %v1863
    %v2453 = vunpack.c.h.b16 %v1863
    %v2454 = vunpack.c.l.b16 %v1864
    %v2455 = vunpack.c.h.b16 %v1864
    %v2456 = vunpack.c.l.b16 %v1865
    %v2457 = vunpack.c.l.b16 %v1866
    %v2458 = vunpack.c.h.b16 %v1866
    %v2459 = vunpack.c.l.b16 %v1867
    %v2460 = vunpack.c.h.b16 %v1867
    %v2461 = vunpack.c.l.b16 %v1868
    %v2462 = vunpack.c.h.b16 %v1868
    %v2463 = vunpack.c.l.b16 %v1869
    %v2464 = vunpack.c.l.b16 %v1870
    %v2465 = vunpack.c.h.b16 %v1870
    %v2466 = vunpack.c.l.b16 %v1871
    %v2467 = vunpack.c.h.b16 %v1871
    %v2468 = vunpack.c.l.b16 %v1872
    %v2469 = vunpack.c.h.b16 %v1872
    %v2470 = vunpack.c.l.b16 %v1873
    %v2471 = vunpack.c.l.b16 %v1874
    %v2472 = vunpack.c.h.b16 %v1874
    %v2473 = vunpack.c.l.b16 %v1875
    %v2474 = vunpack.c.h.b16 %v1875
    %v2475 = vunpack.c.l.b16 %v1876
    %v2476 = vunpack.c.h.b16 %v1876
    %v2477 = vunpack.c.l.b16 %v1877
    %v2478 = vunpack.c.l.b16 %v1878
    %v2479 = vunpack.c.h.b16 %v1878
    %v2480 = vunpack.c.l.b16 %v1879
    %v2481 = vunpack.c.h.b16 %v1879
    %v2482 = vunpack.c.l.b16 %v1880
    %v2483 = vunpack.c.h.b16 %v1880
    %v2484 = vunpack.c.l.b16 %v1881
    %v2485 = vunpack.c.l.b16 %v1882
    %v2486 = vunpack.c.h.b16 %v1882
    %v2487 = vunpack.c.l.b16 %v1883
    %v2488 = vunpack.c.h.b16 %v1883
    %v2489 = vunpack.c.l.b16 %v1884
    %v2490 = vunpack.c.h.b16 %v1884
    %v2491 = vunpack.c.l.b16 %v1885
    %v2492 = vunpack.c.l.b16 %v1886
    %v2493 = vunpack.c.h.b16 %v1886
    %v2494 = vunpack.c.l.b16 %v1887
    %v2495 = vunpack.c.h.b16 %v1887
    %v2496 = vunpack.c.l.b16 %v1888
    %v2497 = vunpack.c.h.b16 %v1888
    %v2498 = vunpack.c.l.b16 %v1889
    %v2499 = vunpack.c.l.b16 %v1890
    %v2500 = vunpack.c.h.b16 %v1890
    %v2501 = vunpack.c.l.b16 %v1891
    %v2502 = vunpack.c.h.b16 %v1891
    %v2503 = vunpack.c.l.b16 %v1892
    %v2504 = vunpack.c.h.b16 %v1892
    %v2505 = vunpack.c.l.b16 %v1893
    %v2506 = vunpack.c.l.b16 %v1894
    %v2507 = vunpack.c.h.b16 %v1894
    %v2508 = vunpack.c.l.b16 %v1895
    %v2509 = vunpack.c.h.b16 %v1895
    %v2510 = vunpack.c.l.b16 %v1896
    %v2511 = vunpack.c.h.b16 %v1896
    %v2512 = vunpack.c.l.b16 %v1897
    %v2513 = vunpack.c.l.b16 %v1898
    %v2514 = vunpack.c.h.b16 %v1898
    %v2515 = vunpack.c.l.b16 %v1899
    %v2516 = vunpack.c.h.b16 %v1899
    %v2517 = vunpack.c.l.b16 %v1900
    %v2518 = vunpack.c.h.b16 %v1900
    %v2519 = vunpack.c.l.b16 %v1901
    %v2520 = vunpack.c.l.b16 %v1902
    %v2521 = vunpack.c.h.b16 %v1902
    %v2522 = vunpack.c.l.b16 %v1903
    %v2523 = vunpack.c.h.b16 %v1903
    %v2524 = vunpack.c.l.b16 %v1904
    %v2525 = vunpack.c.h.b16 %v1904
    %v2526 = vunpack.c.l.b16 %v1905
    %v2527 = vunpack.c.l.b16 %v1906
    %v2528 = vunpack.c.h.b16 %v1906
    %v2529 = vunpack.c.l.b16 %v1907
    %v2530 = vunpack.c.h.b16 %v1907
    %v2531 = vunpack.c.l.b16 %v1908
    %v2532 = vunpack.c.h.b16 %v1908
    %v2533 = vunpack.c.l.b16 %v1909
    %v2534 = vunpack.c.l.b16 %v1910
    %v2535 = vunpack.c.h.b16 %v1910
    %v2536 = vunpack.c.l.b16 %v1911
    %v2537 = vunpack.c.h.b16 %v1911
    %v2538 = vunpack.c.l.b16 %v1912
    %v2539 = vunpack.c.h.b16 %v1912
    %v2540 = vunpack.c.l.b16 %v1913
    %v2541 = vunpack.c.l.b16 %v1914
    %v2542 = vunpack.c.h.b16 %v1914
    %v2543 = vunpack.c.l.b16 %v1915
    %v2544 = vunpack.c.h.b16 %v1915
    %v2545 = vunpack.c.l.b16 %v1916
    %v2546 = vunpack.c.h.b16 %v1916
    %v2547 = vunpack.c.l.b16 %v1917
    %v2548 = vunpack.c.l.b16 %v1918
    %v2549 = vunpack.c.h.b16 %v1918
    %v2550 = vunpack.c.l.b16 %v1919
    %v2551 = vunpack.c.h.b16 %v1919
    %v2552 = vunpack.c.l.b16 %v1920
    %v2553 = vunpack.c.h.b16 %v1920
    %v2554 = vunpack.c.l.b16 %v1921
    %v2555 = vunpack.c.l.b16 %v1922
    %v2556 = vunpack.c.h.b16 %v1922
    %v2557 = vunpack.c.l.b16 %v1923
    %v2558 = vunpack.c.h.b16 %v1923
    %v2559 = vunpack.c.l.b16 %v1924
    %v2560 = vunpack.c.h.b16 %v1924
    %v2561 = vunpack.c.l.b16 %v1925
    %v2562 = vunpack.c.l.b16 %v1926
    %v2563 = vunpack.c.h.b16 %v1926
    %v2564 = vunpack.c.l.b16 %v1927
    %v2565 = vunpack.c.h.b16 %v1927
    %v2566 = vunpack.c.l.b16 %v1928
    %v2567 = vunpack.c.h.b16 %v1928
    %v2568 = vunpack.c.l.b16 %v1929
    %v2569 = vunpack.c.l.b16 %v1930
    %v2570 = vunpack.c.h.b16 %v1930
    %v2571 = vunpack.c.l.b16 %v1931
    %v2572 = vunpack.c.h.b16 %v1931
    %v2573 = vunpack.c.l.b16 %v1932
    %v2574 = vunpack.c.h.b16 %v1932
    %v2575 = vunpack.c.l.b16 %v1933
    %v2576 = vunpack.c.l.b16 %v1934
    %v2577 = vunpack.c.h.b16 %v1934
    %v2578 = vunpack.c.l.b16 %v1935
    %v2579 = vunpack.c.h.b16 %v1935
    %v2580 = vunpack.c.l.b16 %v1936
    %v2581 = vunpack.c.h.b16 %v1936
    %v2582 = vunpack.c.l.b16 %v1937
    %v2583 = vunpack.c.l.b16 %v1938
    %v2584 = vunpack.c.h.b16 %v1938
    %v2585 = vunpack.c.l.b16 %v1939
    %v2586 = vunpack.c.h.b16 %v1939
    %v2587 = vunpack.c.l.b16 %v1940
    %v2588 = vunpack.c.h.b16 %v1940
    %v2589 = vunpack.c.l.b16 %v1941
    %v2590 = vunpack.c.l.b16 %v1942
    %v2591 = vunpack.c.h.b16 %v1942
    %v2592 = vunpack.c.l.b16 %v1943
    %v2593 = vunpack.c.h.b16 %v1943
    %v2594 = vunpack.c.l.b16 %v1944
    %v2595 = vunpack.c.h.b16 %v1944
    %v2596 = vunpack.c.l.b16 %v1945
    %v2597 = vunpack.c.l.b16 %v1946
    %v2598 = vunpack.c.h.b16 %v1946
    %v2599 = vunpack.c.l.b16 %v1947
    %v2600 = vunpack.c.h.b16 %v1947
    %v2601 = vunpack.c.l.b16 %v1948
    %v2602 = vunpack.c.h.b16 %v1948
    %v2603 = vunpack.c.l.b16 %v1949
    %v2604 = vunpack.c.l.b16 %v1950
    %v2605 = vunpack.c.h.b16 %v1950
    %v2606 = vunpack.c.l.b16 %v1951
    %v2607 = vunpack.c.h.b16 %v1951
    %v2608 = vunpack.c.l.b16 %v1952
    %v2609 = vunpack.c.h.b16 %v1952
    %v2610 = vunpack.c.l.b16 %v1953
    %v2611 = vunpack.c.l.b16 %v1954
    %v2612 = vunpack.c.h.b16 %v1954
    %v2613 = vunpack.c.l.b16 %v1955
    %v2614 = vunpack.c.h.b16 %v1955
    %v2615 = vunpack.c.l.b16 %v1956
    %v2616 = vunpack.c.h.b16 %v1956
    %v2617 = vunpack.c.l.b16 %v1957
    %v2618 = vunpack.c.l.b16 %v1958
    %v2619 = vunpack.c.h.b16 %v1958
    %v2620 = vunpack.c.l.b16 %v1959
    %v2621 = vunpack.c.h.b16 %v1959
    %v2622 = vunpack.c.l.b16 %v1960
    %v2623 = vunpack.c.h.b16 %v1960
    %v2624 = vunpack.c.l.b16 %v1961
    %v2625 = vunpack.c.l.b16 %v1962
    %v2626 = vunpack.c.h.b16 %v1962
    %v2627 = vunpack.c.l.b16 %v1963
    %v2628 = vunpack.c.h.b16 %v1963
    %v2629 = vunpack.c.l.b16 %v1964
    %v2630 = vunpack.c.h.b16 %v1964
    %v2631 = vunpack.c.l.b16 %v1965
    %v2632 = vunpack.c.l.b16 %v1966
    %v2633 = vunpack.c.h.b16 %v1966
    %v2634 = vunpack.c.l.b16 %v1967
    %v2635 = vunpack.c.h.b16 %v1967
    %v2636 = vunpack.c.l.b16 %v1968
    %v2637 = vunpack.c.h.b16 %v1968
    %v2638 = vunpack.c.l.b16 %v1969
    %v2639 = vunpack.c.l.b16 %v1970
    %v2640 = vunpack.c.h.b16 %v1970
    %v2641 = vunpack.c.l.b16 %v1971
    %v2642 = vunpack.c.h.b16 %v1971
    %v2643 = vunpack.c.l.b16 %v1972
    %v2644 = vunpack.c.h.b16 %v1972
    %v2645 = vunpack.c.l.b16 %v1973
    %v2646 = vunpack.c.l.b16 %v1974
    %v2647 = vunpack.c.h.b16 %v1974
    %v2648 = vunpack.c.l.b16 %v1975
    %v2649 = vunpack.c.h.b16 %v1975
    %v2650 = vunpack.c.l.b16 %v1976
    %v2651 = vunpack.c.h.b16 %v1976
    %v2652 = vunpack.c.l.b16 %v1977
    %v2653 = vunpack.c.l.b16 %v1978
    %v2654 = vunpack.c.h.b16 %v1978
    %v2655 = vunpack.c.l.b16 %v1979
    %v2656 = vunpack.c.h.b16 %v1979
    %v2657 = vunpack.c.l.b16 %v1980
    %v2658 = vunpack.c.h.b16 %v1980
    %v2659 = vunpack.c.l.b16 %v1981
    %v2660 = vunpack.c.l.b16 %v1982
    %v2661 = vunpack.c.h.b16 %v1982
    %v2662 = vunpack.c.l.b16 %v1983
    %v2663 = vunpack.c.h.b16 %v1983
    %v2664 = vunpack.c.l.b16 %v1984
    %v2665 = vunpack.c.h.b16 %v1984
    %v2666 = vunpack.c.l.b16 %v1985
    %v2667 = vunpack.c.l.b16 %v1986
    %v2668 = vunpack.c.h.b16 %v1986
    %v2669 = vunpack.c.l.b16 %v1987
    %v2670 = vunpack.c.h.b16 %v1987
    %v2671 = vunpack.c.l.b16 %v1988
    %v2672 = vunpack.c.h.b16 %v1988
    %v2673 = vunpack.c.l.b16 %v1989
    %v2674 = vunpack.c.l.b16 %v1990
    %v2675 = vunpack.c.h.b16 %v1990
    %v2676 = vunpack.c.l.b16 %v1991
    %v2677 = vunpack.c.h.b16 %v1991
    %v2678 = vunpack.c.l.b16 %v1992
    %v2679 = vunpack.c.h.b16 %v1992
    %v2680 = vunpack.c.l.b16 %v1993
    %v2681 = vunpack.c.l.b16 %v1994
    %v2682 = vunpack.c.h.b16 %v1994
    %v2683 = vunpack.c.l.b16 %v1995
    %v2684 = vunpack.c.h.b16 %v1995
    %v2685 = vunpack.c.l.b16 %v1996
    %v2686 = vunpack.c.h.b16 %v1996
    %v2687 = vunpack.c.l.b16 %v1997
    %v2688 = vunpack.c.l.b16 %v1998
    %v2689 = vunpack.c.h.b16 %v1998
    %v2690 = vunpack.c.l.b16 %v1999
    %v2691 = vunpack.c.h.b16 %v1999
    %v2692 = vunpack.c.l.b16 %v2000
    %v2693 = vunpack.c.h.b16 %v2000
    %v2694 = vunpack.c.l.b16 %v2001
    %v2695 = vunpack.c.l.b16 %v2002
    %v2696 = vunpack.c.h.b16 %v2002
    %v2697 = vunpack.c.l.b16 %v2003
    %v2698 = vunpack.c.h.b16 %v2003
    %v2699 = vunpack.c.l.b16 %v2004
    %v2700 = vunpack.c.h.b16 %v2004
    %v2701 = vunpack.c.l.b16 %v2005
    %v2702 = vunpack.c.l.b16 %v2006
    %v2703 = vunpack.c.h.b16 %v2006
    %v2704 = vunpack.c.l.b16 %v2007
    %v2705 = vunpack.c.h.b16 %v2007
    %v2706 = vunpack.c.l.b16 %v2008
    %v2707 = vunpack.c.h.b16 %v2008
    %v2708 = vunpack.c.l.b16 %v2009
    %v2709 = vunpack.c.l.b16 %v2010
    %v2710 = vunpack.c.h.b16 %v2010
    %v2711 = vunpack.c.l.b16 %v2011
    %v2712 = vunpack.c.h.b16 %v2011
    %v2713 = vunpack.c.l.b16 %v2012
    %v2714 = vunpack.c.h.b16 %v2012
    %v2715 = vunpack.c.l.b16 %v2013
    %v2716 = vunpack.c.l.b16 %v2014
    %v2717 = vunpack.c.h.b16 %v2014
    %v2718 = vunpack.c.l.b16 %v2015
    %v2719 = vunpack.c.h.b16 %v2015
    %v2720 = vunpack.c.l.b16 %v2016
    %v2721 = vunpack.c.h.b16 %v2016
    %v2722 = vunpack.c.l.b16 %v2017
    %v2723 = vunpack.c.l.b16 %v2018
    %v2724 = vunpack.c.h.b16 %v2018
    %v2725 = vunpack.c.l.b16 %v2019
    %v2726 = vunpack.c.h.b16 %v2019
    %v2727 = vunpack.c.l.b16 %v2020
    %v2728 = vunpack.c.h.b16 %v2020
    %v2729 = vunpack.c.l.b16 %v2021
    %v2730 = vunpack.c.l.b16 %v2022
    %v2731 = vunpack.c.h.b16 %v2022
    %v2732 = vunpack.c.l.b16 %v2023
    %v2733 = vunpack.c.h.b16 %v2023
    %v2734 = vunpack.c.l.b16 %v2024
    %v2735 = vunpack.c.h.b16 %v2024
    %v2736 = vunpack.c.l.b16 %v2025
    %v2737 = vunpack.c.l.b16 %v2026
    %v2738 = vunpack.c.h.b16 %v2026
    %v2739 = vunpack.c.l.b16 %v2027
    %v2740 = vunpack.c.h.b16 %v2027
    %v2741 = vunpack.c.l.b16 %v2028
    %v2742 = vunpack.c.h.b16 %v2028
    %v2743 = vunpack.c.l.b16 %v2029
    %v2744 = vunpack.c.l.b16 %v2030
    %v2745 = vunpack.c.h.b16 %v2030
    %v2746 = vunpack.c.l.b16 %v2031
    %v2747 = vunpack.c.h.b16 %v2031
    %v2748 = vunpack.c.l.b16 %v2032
    %v2749 = vunpack.c.h.b16 %v2032
    %v2750 = vunpack.c.l.b16 %v2033
    %v2751 = vunpack.c.l.b16 %v2034
    %v2752 = vunpack.c.h.b16 %v2034
    %v2753 = vunpack.c.l.b16 %v2035
    %v2754 = vunpack.c.h.b16 %v2035
    %v2755 = vunpack.c.l.b16 %v2036
    %v2756 = vunpack.c.h.b16 %v2036
    %v2757 = vunpack.c.l.b16 %v2037
    %v2758 = vunpack.c.l.b16 %v2038
    %v2759 = vunpack.c.h.b16 %v2038
    %v2760 = vunpack.c.l.b16 %v2039
    %v2761 = vunpack.c.h.b16 %v2039
    %v2762 = vunpack.c.l.b16 %v2040
    %v2763 = vunpack.c.h.b16 %v2040
    %v2764 = vunpack.c.l.b16 %v2041
    %v2765 = vunpack.c.l.b16 %v2042
    %v2766 = vunpack.c.h.b16 %v2042
    %v2767 = vunpack.c.l.b16 %v2043
    %v2768 = vunpack.c.h.b16 %v2043
    %v2769 = vunpack.c.l.b16 %v2044
    %v2770 = vunpack.c.h.b16 %v2044
    %v2771 = vunpack.c.l.b16 %v2045
    %v2772 = vunpack.c.l.b16 %v2046
    %v2773 = vunpack.c.h.b16 %v2046
    %v2774 = vunpack.c.l.b16 %v2047
    %v2775 = vunpack.c.h.b16 %v2047
    %v2776 = vunpack.c.l.b16 %v2048
    %v2777 = vunpack.c.h.b16 %v2048
    %v2778 = vunpack.c.l.b16 %v2049
    %v2779 = vunpack.c.l.b16 %v2050
    %v2780 = vunpack.c.h.b16 %v2050
    %v2781 = vunpack.c.l.b16 %v2051
    %v2782 = vunpack.c.h.b16 %v2051
    %v2783 = vunpack.c.l.b16 %v2052
    %v2784 = vunpack.c.h.b16 %v2052
    %v2785 = vunpack.c.l.b16 %v2053
    %v2786 = vunpack.c.l.b16 %v2054
    %v2787 = vunpack.c.h.b16 %v2054
    %v2788 = vunpack.c.l.b16 %v2055
    %v2789 = vunpack.c.h.b16 %v2055
    %v2790 = vunpack.c.l.b16 %v2056
    %v2791 = vunpack.c.h.b16 %v2056
    %v2792 = vunpack.c.l.b16 %v2057
    %v2793 = vunpack.c.l.b16 %v2058
    %v2794 = vunpack.c.h.b16 %v2058
    %v2795 = vunpack.c.l.b16 %v2059
    %v2796 = vunpack.c.h.b16 %v2059
    %v2797 = vunpack.c.l.b16 %v2060
    %v2798 = vunpack.c.h.b16 %v2060
    %v2799 = vunpack.c.l.b16 %v2061
    %v2800 = vunpack.c.l.b16 %v2062
    %v2801 = vunpack.c.h.b16 %v2062
    %v2802 = vunpack.c.l.b16 %v2063
    %v2803 = vunpack.c.h.b16 %v2063
    %v2804 = vunpack.c.l.b16 %v2064
    %v2805 = vunpack.c.h.b16 %v2064
    %v2806 = vunpack.c.l.b16 %v2065
    %v2807 = vpack.c.b16 %v2366, %v2359
    %v2808 = vpack.c.b16 %v2367, %v2360
    %v2809 = vpack.c.b16 %v2368, %v2361
    %v2810 = vpack.c.b16 %v2369, %v2362
    %v2811 = vpack.c.b16 %v2370, %v2363
    %v2812 = vpack.c.b16 %v2371, %v2364
    %v2813 = vpack.c.b16 %v2372, %v2365
    %v2814 = vpack.c.b16 %v2380, %v2373
    %v2815 = vpack.c.b16 %v2381, %v2374
    %v2816 = vpack.c.b16 %v2382, %v2375
    %v2817 = vpack.c.b16 %v2383, %v2376
    %v2818 = vpack.c.b16 %v2384, %v2377
    %v2819 = vpack.c.b16 %v2385, %v2378
    %v2820 = vpack.c.b16 %v2386, %v2379
    %v2821 = vpack.c.b16 %v2394, %v2387
    %v2822 = vpack.c.b16 %v2395, %v2388
    %v2823 = vpack.c.b16 %v2396, %v2389
    %v2824 = vpack.c.b16 %v2397, %v2390
    %v2825 = vpack.c.b16 %v2398, %v2391
    %v2826 = vpack.c.b16 %v2399, %v2392
    %v2827 = vpack.c.b16 %v2400, %v2393
    %v2828 = vpack.c.b16 %v2408, %v2401
    %v2829 = vpack.c.b16 %v2409, %v2402
    %v2830 = vpack.c.b16 %v2410, %v2403
    %v2831 = vpack.c.b16 %v2411, %v2404
    %v2832 = vpack.c.b16 %v2412, %v2405
    %v2833 = vpack.c.b16 %v2413, %v2406
    %v2834 = vpack.c.b16 %v2414, %v2407
    %v2835 = vpack.c.b16 %v2422, %v2415
    %v2836 = vpack.c.b16 %v2423, %v2416
    %v2837 = vpack.c.b16 %v2424, %v2417
    %v2838 = vpack.c.b16 %v2425, %v2418
    %v2839 = vpack.c.b16 %v2426, %v2419
    %v2840 = vpack.c.b16 %v2427, %v2420
    %v2841 = vpack.c.b16 %v2428, %v2421
    %v2842 = vpack.c.b16 %v2436, %v2429
    %v2843 = vpack.c.b16 %v2437, %v2430
    %v2844 = vpack.c.b16 %v2438, %v2431
    %v2845 = vpack.c.b16 %v2439, %v2432
    %v2846 = vpack.c.b16 %v2440, %v2433
    %v2847 = vpack.c.b16 %v2441, %v2434
    %v2848 = vpack.c.b16 %v2442, %v2435
    %v2849 = vpack.c.b16 %v2450, %v2443
    %v2850 = vpack.c.b16 %v2451, %v2444
    %v2851 = vpack.c.b16 %v2452, %v2445
    %v2852 = vpack.c.b16 %v2453, %v2446
    %v2853 = vpack.c.b16 %v2454, %v2447
    %v2854 = vpack.c.b16 %v2455, %v2448
    %v2855 = vpack.c.b16 %v2456, %v2449
    %v2856 = vpack.c.b16 %v2464, %v2457
    %v2857 = vpack.c.b16 %v2465, %v2458
    %v2858 = vpack.c.b16 %v2466, %v2459
    %v2859 = vpack.c.b16 %v2467, %v2460
    %v2860 = vpack.c.b16 %v2468, %v2461
    %v2861 = vpack.c.b16 %v2469, %v2462
    %v2862 = vpack.c.b16 %v2470, %v2463
    %v2863 = vpack.c.b16 %v2478, %v2471
    %v2864 = vpack.c.b16 %v2479, %v2472
    %v2865 = vpack.c.b16 %v2480, %v2473
    %v2866 = vpack.c.b16 %v2481, %v2474
    %v2867 = vpack.c.b16 %v2482, %v2475
    %v2868 = vpack.c.b16 %v2483, %v2476
    %v2869 = vpack.c.b16 %v2484, %v2477
    %v2870 = vpack.c.b16 %v2492, %v2485
    %v2871 = vpack.c.b16 %v2493, %v2486
    %v2872 = vpack.c.b16 %v2494, %v2487
    %v2873 = vpack.c.b16 %v2495, %v2488
    %v2874 = vpack.c.b16 %v2496, %v2489
    %v2875 = vpack.c.b16 %v2497, %v2490
    %v2876 = vpack.c.b16 %v2498, %v2491
    %v2877 = vpack.c.b16 %v2506, %v2499
    %v2878 = vpack.c.b16 %v2507, %v2500
    %v2879 = vpack.c.b16 %v2508, %v2501
    %v2880 = vpack.c.b16 %v2509, %v2502
    %v2881 = vpack.c.b16 %v2510, %v2503
    %v2882 = vpack.c.b16 %v2511, %v2504
    %v2883 = vpack.c.b16 %v2512, %v2505
    %v2884 = vpack.c.b16 %v2520, %v2513
    %v2885 = vpack.c.b16 %v2521, %v2514
    %v2886 = vpack.c.b16 %v2522, %v2515
    %v2887 = vpack.c.b16 %v2523, %v2516
    %v2888 = vpack.c.b16 %v2524, %v2517
    %v2889 = vpack.c.b16 %v2525, %v2518
    %v2890 = vpack.c.b16 %v2526, %v2519
    %v2891 = vpack.c.b16 %v2534, %v2527
    %v2892 = vpack.c.b16 %v2535, %v2528
    %v2893 = vpack.c.b16 %v2536, %v2529
    %v2894 = vpack.c.b16 %v2537, %v2530
    %v2895 = vpack.c.b16 %v2538, %v2531
    %v2896 = vpack.c.b16 %v2539, %v2532
    %v2897 = vpack.c.b16 %v2540, %v2533
    %v2898 = vpack.c.b16 %v2548, %v2541
    %v2899 = vpack.c.b16 %v2549, %v2542
    %v2900 = vpack.c.b16 %v2550, %v2543
    %v2901 = vpack.c.b16 %v2551, %v2544
    %v2902 = vpack.c.b16 %v2552, %v2545
    %v2903 = vpack.c.b16 %v2553, %v2546
    %v2904 = vpack.c.b16 %v2554, %v2547
    %v2905 = vpack.c.b16 %v2562, %v2555
    %v2906 = vpack.c.b16 %v2563, %v2556
    %v2907 = vpack.c.b16 %v2564, %v2557
    %v2908 = vpack.c.b16 %v2565, %v2558
    %v2909 = vpack.c.b16 %v2566, %v2559
    %v2910 = vpack.c.b16 %v2567, %v2560
    %v2911 = vpack.c.b16 %v2568, %v2561
    %v2912 = vpack.c.b16 %v2576, %v2569
    %v2913 = vpack.c.b16 %v2577, %v2570
    %v2914 = vpack.c.b16 %v2578, %v2571
    %v2915 = vpack.c.b16 %v2579, %v2572
    %v2916 = vpack.c.b16 %v2580, %v2573
    %v2917 = vpack.c.b16 %v2581, %v2574
    %v2918 = vpack.c.b16 %v2582, %v2575
    %v2919 = vpack.c.b16 %v2590, %v2583
    %v2920 = vpack.c.b16 %v2591, %v2584
    %v2921 = vpack.c.b16 %v2592, %v2585
    %v2922 = vpack.c.b16 %v2593, %v2586
    %v2923 = vpack.c.b16 %v2594, %v2587
    %v2924 = vpack.c.b16 %v2595, %v2588
    %v2925 = vpack.c.b16 %v2596, %v2589
    %v2926 = vpack.c.b16 %v2604, %v2597
    %v2927 = vpack.c.b16 %v2605, %v2598
    %v2928 = vpack.c.b16 %v2606, %v2599
    %v2929 = vpack.c.b16 %v2607, %v2600
    %v2930 = vpack.c.b16 %v2608, %v2601
    %v2931 = vpack.c.b16 %v2609, %v2602
    %v2932 = vpack.c.b16 %v2610, %v2603
    %v2933 = vpack.c.b16 %v2618, %v2611
    %v2934 = vpack.c.b16 %v2619, %v2612
    %v2935 = vpack.c.b16 %v2620, %v2613
    %v2936 = vpack.c.b16 %v2621, %v2614
    %v2937 = vpack.c.b16 %v2622, %v2615
    %v2938 = vpack.c.b16 %v2623, %v2616
    %v2939 = vpack.c.b16 %v2624, %v2617
    %v2940 = vpack.c.b16 %v2632, %v2625
    %v2941 = vpack.c.b16 %v2633, %v2626
    %v2942 = vpack.c.b16 %v2634, %v2627
    %v2943 = vpack.c.b16 %v2635, %v2628
    %v2944 = vpack.c.b16 %v2636, %v2629
    %v2945 = vpack.c.b16 %v2637, %v2630
    %v2946 = vpack.c.b16 %v2638, %v2631
    %v2947 = vpack.c.b16 %v2646, %v2639
    %v2948 = vpack.c.b16 %v2647, %v2640
    %v2949 = vpack.c.b16 %v2648, %v2641
    %v2950 = vpack.c.b16 %v2649, %v2642
    %v2951 = vpack.c.b16 %v2650, %v2643
    %v2952 = vpack.c.b16 %v2651, %v2644
    %v2953 = vpack.c.b16 %v2652, %v2645
    %v2954 = vpack.c.b16 %v2660, %v2653
    %v2955 = vpack.c.b16 %v2661, %v2654
    %v2956 = vpack.c.b16 %v2662, %v2655
    %v2957 = vpack.c.b16 %v2663, %v2656
    %v2958 = vpack.c.b16 %v2664, %v2657
    %v2959 = vpack.c.b16 %v2665, %v2658
    %v2960 = vpack.c.b16 %v2666, %v2659
    %v2961 = vpack.c.b16 %v2674, %v2667
    %v2962 = vpack.c.b16 %v2675, %v2668
    %v2963 = vpack.c.b16 %v2676, %v2669
    %v2964 = vpack.c.b16 %v2677, %v2670
    %v2965 = vpack.c.b16 %v2678, %v2671
    %v2966 = vpack.c.b16 %v2679, %v2672
    %v2967 = vpack.c.b16 %v2680, %v2673
    %v2968 = vpack.c.b16 %v2688, %v2681
    %v2969 = vpack.c.b16 %v2689, %v2682
    %v2970 = vpack.c.b16 %v2690, %v2683
    %v2971 = vpack.c.b16 %v2691, %v2684
    %v2972 = vpack.c.b16 %v2692, %v2685
    %v2973 = vpack.c.b16 %v2693, %v2686
    %v2974 = vpack.c.b16 %v2694, %v2687
    %v2975 = vpack.c.b16 %v2702, %v2695
    %v2976 = vpack.c.b16 %v2703, %v2696
    %v2977 = vpack.c.b16 %v2704, %v2697
    %v2978 = vpack.c.b16 %v2705, %v2698
    %v2979 = vpack.c.b16 %v2706, %v2699
    %v2980 = vpack.c.b16 %v2707, %v2700
    %v2981 = vpack.c.b16 %v2708, %v2701
    %v2982 = vpack.c.b16 %v2716, %v2709
    %v2983 = vpack.c.b16 %v2717, %v2710
    %v2984 = vpack.c.b16 %v2718, %v2711
    %v2985 = vpack.c.b16 %v2719, %v2712
    %v2986 = vpack.c.b16 %v2720, %v2713
    %v2987 = vpack.c.b16 %v2721, %v2714
    %v2988 = vpack.c.b16 %v2722, %v2715
    %v2989 = vpack.c.b16 %v2730, %v2723
    %v2990 = vpack.c.b16 %v2731, %v2724
    %v2991 = vpack.c.b16 %v2732, %v2725
    %v2992 = vpack.c.b16 %v2733, %v2726
    %v2993 = vpack.c.b16 %v2734, %v2727
    %v2994 = vpack.c.b16 %v2735, %v2728
    %v2995 = vpack.c.b16 %v2736, %v2729
    %v2996 = vpack.c.b16 %v2744, %v2737
    %v2997 = vpack.c.b16 %v2745, %v2738
    %v2998 = vpack.c.b16 %v2746, %v2739
    %v2999 = vpack.c.b16 %v2747, %v2740
    %v3000 = vpack.c.b16 %v2748, %v2741
    %v3001 = vpack.c.b16 %v2749, %v2742
    %v3002 = vpack.c.b16 %v2750, %v2743
    %v3003 = vpack.c.b16 %v2758, %v2751
    %v3004 = vpack.c.b16 %v2759, %v2752
    %v3005 = vpack.c.b16 %v2760, %v2753
    %v3006 = vpack.c.b16 %v2761, %v2754
    %v3007 = vpack.c.b16 %v2762, %v2755
    %v3008 = vpack.c.b16 %v2763, %v2756
    %v3009 = vpack.c.b16 %v2764, %v2757
    %v3010 = vpack.c.b16 %v2772, %v2765
    %v3011 = vpack.c.b16 %v2773, %v2766
    %v3012 = vpack.c.b16 %v2774, %v2767
    %v3013 = vpack.c.b16 %v2775, %v2768
    %v3014 = vpack.c.b16 %v2776, %v2769
    %v3015 = vpack.c.b16 %v2777, %v2770
    %v3016 = vpack.c.b16 %v2778, %v2771
    %v3017 = vpack.c.b16 %v2786, %v2779
    %v3018 = vpack.c.b16 %v2787, %v2780
    %v3019 = vpack.c.b16 %v2788, %v2781
    %v3020 = vpack.c.b16 %v2789, %v2782
    %v3021 = vpack.c.b16 %v2790, %v2783
    %v3022 = vpack.c.b16 %v2791, %v2784
    %v3023 = vpack.c.b16 %v2792, %v2785
    %v3024 = vpack.c.b16 %v2800, %v2793
    %v3025 = vpack.c.b16 %v2801, %v2794
    %v3026 = vpack.c.b16 %v2802, %v2795
    %v3027 = vpack.c.b16 %v2803, %v2796
    %v3028 = vpack.c.b16 %v2804, %v2797
    %v3029 = vpack.c.b16 %v2805, %v2798
    %v3030 = vpack.c.b16 %v2806, %v2799
    %3255 = vmatprep.subr.bf16.mxu0 %v2857
    %3256 = vmatpush1.bf16.msra.mxu0 %v2856
    %3257 = vmatprep.subr.bf16.mxu0 %v2850
    %3258 = vmatpush1.bf16.msra.mxu0 %v2849
    %3259 = vmatprep.subr.bf16.mxu0 %v2843
    %3260 = vmatpush1.bf16.msra.mxu0 %v2842
    %3261 = vmatprep.subr.bf16.mxu0 %v2836
    %3262 = vmatpush1.bf16.msra.mxu0 %v2835
    %3263 = vmatprep.subr.bf16.mxu0 %v2829
    %3264 = vmatpush1.bf16.msra.mxu0 %v2828
    %3265 = vmatprep.subr.bf16.mxu0 %v2822
    %3266 = vmatpush1.bf16.msra.mxu0 %v2821
    %3267 = vmatprep.subr.bf16.mxu0 %v2815
    %3268 = vmatpush1.bf16.msra.mxu0 %v2814
    %3269 = vmatprep.subr.bf16.mxu0 %v2808
    %3270 = vmatpush1.bf16.msra.mxu0 %v2807
    %3271 = vmatprep.subr.bf16.mxu0 %v2913
    %3272 = vmatpush2.bf16.msra.mxu0 %v2912
    %3273 = vmatprep.subr.bf16.mxu0 %v2906
    %3274 = vmatpush2.bf16.msra.mxu0 %v2905
    %3275 = vmatprep.subr.bf16.mxu0 %v2899
    %3276 = vmatpush2.bf16.msra.mxu0 %v2898
    %3277 = vmatprep.subr.bf16.mxu0 %v2892
    %3278 = vmatpush2.bf16.msra.mxu0 %v2891
    %3279 = vmatprep.subr.bf16.mxu0 %v2885
    %3280 = vmatpush2.bf16.msra.mxu0 %v2884
    %3281 = vmatprep.subr.bf16.mxu0 %v2878
    %3282 = vmatpush2.bf16.msra.mxu0 %v2877
    %3283 = vmatprep.subr.bf16.mxu0 %v2871
    %3284 = vmatpush2.bf16.msra.mxu0 %v2870
    %3285 = vmatprep.subr.bf16.mxu0 %v2864
    %3286 = vmatpush2.bf16.msra.mxu0 %v2863
    %3287 = vmatprep.mubr.bf16.mxu0 %v1807
    %3288 = vmatmul.mubr.bf16.gmra.mxu0 %v1806
    %v3289 = vpop.f32.mrf.mxu0
    %v3290 = vadd.f32 %v2071, %v3289
    %v3291 = vpop.f32.mrf.mxu0
    %v3292 = vadd.f32 %v2075, %v3291
    %v3293 = vpop.f32.mrf.mxu0
    %v3294 = vadd.f32 %v2071, %v3293
    %v3295 = vpop.f32.mrf.mxu0
    %v3296 = vadd.f32 %v2075, %v3295
    %3297 = vdwg.mxu0
    %3298 = vmatprep.subr.bf16.mxu0 %v2969
    %3299 = vmatpush1.bf16.msra.mxu0 %v2968
    %3300 = vmatprep.subr.bf16.mxu0 %v2962
    %3301 = vmatpush1.bf16.msra.mxu0 %v2961
    %3302 = vmatprep.subr.bf16.mxu0 %v2955
    %3303 = vmatpush1.bf16.msra.mxu0 %v2954
    %3304 = vmatprep.subr.bf16.mxu0 %v2948
    %3305 = vmatpush1.bf16.msra.mxu0 %v2947
    %3306 = vmatprep.subr.bf16.mxu0 %v2941
    %3307 = vmatpush1.bf16.msra.mxu0 %v2940
    %3308 = vmatprep.subr.bf16.mxu0 %v2934
    %3309 = vmatpush1.bf16.msra.mxu0 %v2933
    %3310 = vmatprep.subr.bf16.mxu0 %v2927
    %3311 = vmatpush1.bf16.msra.mxu0 %v2926
    %3312 = vmatprep.subr.bf16.mxu0 %v2920
    %3313 = vmatpush1.bf16.msra.mxu0 %v2919
    %3314 = vmatprep.subr.bf16.mxu0 %v3025
    %3315 = vmatpush2.bf16.msra.mxu0 %v3024
    %3316 = vmatprep.subr.bf16.mxu0 %v3018
    %3317 = vmatpush2.bf16.msra.mxu0 %v3017
    %3318 = vmatprep.subr.bf16.mxu0 %v3011
    %3319 = vmatpush2.bf16.msra.mxu0 %v3010
    %3320 = vmatprep.subr.bf16.mxu0 %v3004
    %3321 = vmatpush2.bf16.msra.mxu0 %v3003
    %3322 = vmatprep.subr.bf16.mxu0 %v2997
    %3323 = vmatpush2.bf16.msra.mxu0 %v2996
    %3324 = vmatprep.subr.bf16.mxu0 %v2990
    %3325 = vmatpush2.bf16.msra.mxu0 %v2989
    %3326 = vmatprep.subr.bf16.mxu0 %v2983
    %3327 = vmatpush2.bf16.msra.mxu0 %v2982
    %3328 = vmatprep.subr.bf16.mxu0 %v2976
    %3329 = vmatpush2.bf16.msra.mxu0 %v2975
    %3330 = vmatprep.mubr.bf16.mxu0 %v1809
    %3331 = vmatmul.mubr.bf16.gmra.mxu0 %v1808
    %v3332 = vpop.f32.mrf.mxu0
    %v3333 = vadd.f32 %v3290, %v3332
    %v3334 = vpop.f32.mrf.mxu0
    %v3335 = vadd.f32 %v3292, %v3334
    %v3336 = vpop.f32.mrf.mxu0
    %v3337 = vadd.f32 %v3294, %v3336
    %v3338 = vpop.f32.mrf.mxu0
    %v3339 = vadd.f32 %v3296, %v3338
    %3340 = vdwg.mxu0
    %3341 = vmatprep.subr.bf16.mxu0 %v2859
    %3342 = vmatpush1.bf16.msra.mxu0 %v2858
    %3343 = vmatprep.subr.bf16.mxu0 %v2852
    %3344 = vmatpush1.bf16.msra.mxu0 %v2851
    %3345 = vmatprep.subr.bf16.mxu0 %v2845
    %3346 = vmatpush1.bf16.msra.mxu0 %v2844
    %3347 = vmatprep.subr.bf16.mxu0 %v2838
    %3348 = vmatpush1.bf16.msra.mxu0 %v2837
    %3349 = vmatprep.subr.bf16.mxu0 %v2831
    %3350 = vmatpush1.bf16.msra.mxu0 %v2830
    %3351 = vmatprep.subr.bf16.mxu0 %v2824
    %3352 = vmatpush1.bf16.msra.mxu0 %v2823
    %3353 = vmatprep.subr.bf16.mxu0 %v2817
    %3354 = vmatpush1.bf16.msra.mxu0 %v2816
    %3355 = vmatprep.subr.bf16.mxu0 %v2810
    %3356 = vmatpush1.bf16.msra.mxu0 %v2809
    %3357 = vmatprep.subr.bf16.mxu0 %v2915
    %3358 = vmatpush2.bf16.msra.mxu0 %v2914
    %3359 = vmatprep.subr.bf16.mxu0 %v2908
    %3360 = vmatpush2.bf16.msra.mxu0 %v2907
    %3361 = vmatprep.subr.bf16.mxu0 %v2901
    %3362 = vmatpush2.bf16.msra.mxu0 %v2900
    %3363 = vmatprep.subr.bf16.mxu0 %v2894
    %3364 = vmatpush2.bf16.msra.mxu0 %v2893
    %3365 = vmatprep.subr.bf16.mxu0 %v2887
    %3366 = vmatpush2.bf16.msra.mxu0 %v2886
    %3367 = vmatprep.subr.bf16.mxu0 %v2880
    %3368 = vmatpush2.bf16.msra.mxu0 %v2879
    %3369 = vmatprep.subr.bf16.mxu0 %v2873
    %3370 = vmatpush2.bf16.msra.mxu0 %v2872
    %3371 = vmatprep.subr.bf16.mxu0 %v2866
    %3372 = vmatpush2.bf16.msra.mxu0 %v2865
    %3373 = vmatprep.mubr.bf16.mxu0 %v1807
    %3374 = vmatmul.mubr.bf16.gmra.mxu0 %v1806
    %v3375 = vpop.f32.mrf.mxu0
    %v3376 = vadd.f32 %v2079, %v3375
    %v3377 = vpop.f32.mrf.mxu0
    %v3378 = vadd.f32 %v2083, %v3377
    %v3379 = vpop.f32.mrf.mxu0
    %v3380 = vadd.f32 %v2079, %v3379
    %v3381 = vpop.f32.mrf.mxu0
    %v3382 = vadd.f32 %v2083, %v3381
    %3383 = vdwg.mxu0
    %3384 = vmatprep.subr.bf16.mxu0 %v2971
    %3385 = vmatpush1.bf16.msra.mxu0 %v2970
    %3386 = vmatprep.subr.bf16.mxu0 %v2964
    %3387 = vmatpush1.bf16.msra.mxu0 %v2963
    %3388 = vmatprep.subr.bf16.mxu0 %v2957
    %3389 = vmatpush1.bf16.msra.mxu0 %v2956
    %3390 = vmatprep.subr.bf16.mxu0 %v2950
    %3391 = vmatpush1.bf16.msra.mxu0 %v2949
    %3392 = vmatprep.subr.bf16.mxu0 %v2943
    %3393 = vmatpush1.bf16.msra.mxu0 %v2942
    %3394 = vmatprep.subr.bf16.mxu0 %v2936
    %3395 = vmatpush1.bf16.msra.mxu0 %v2935
    %3396 = vmatprep.subr.bf16.mxu0 %v2929
    %3397 = vmatpush1.bf16.msra.mxu0 %v2928
    %3398 = vmatprep.subr.bf16.mxu0 %v2922
    %3399 = vmatpush1.bf16.msra.mxu0 %v2921
    %3400 = vmatprep.subr.bf16.mxu0 %v3027
    %3401 = vmatpush2.bf16.msra.mxu0 %v3026
    %3402 = vmatprep.subr.bf16.mxu0 %v3020
    %3403 = vmatpush2.bf16.msra.mxu0 %v3019
    %3404 = vmatprep.subr.bf16.mxu0 %v3013
    %3405 = vmatpush2.bf16.msra.mxu0 %v3012
    %3406 = vmatprep.subr.bf16.mxu0 %v3006
    %3407 = vmatpush2.bf16.msra.mxu0 %v3005
    %3408 = vmatprep.subr.bf16.mxu0 %v2999
    %3409 = vmatpush2.bf16.msra.mxu0 %v2998
    %3410 = vmatprep.subr.bf16.mxu0 %v2992
    %3411 = vmatpush2.bf16.msra.mxu0 %v2991
    %3412 = vmatprep.subr.bf16.mxu0 %v2985
    %3413 = vmatpush2.bf16.msra.mxu0 %v2984
    %3414 = vmatprep.subr.bf16.mxu0 %v2978
    %3415 = vmatpush2.bf16.msra.mxu0 %v2977
    %3416 = vmatprep.mubr.bf16.mxu0 %v1809
    %3417 = vmatmul.mubr.bf16.gmra.mxu0 %v1808
    %v3418 = vpop.f32.mrf.mxu0
    %v3419 = vadd.f32 %v3376, %v3418
    %v3420 = vpop.f32.mrf.mxu0
    %v3421 = vadd.f32 %v3378, %v3420
    %v3422 = vpop.f32.mrf.mxu0
    %v3423 = vadd.f32 %v3380, %v3422
    %v3424 = vpop.f32.mrf.mxu0
    %v3425 = vadd.f32 %v3382, %v3424
    %3426 = vdwg.mxu0
    %3427 = vmatprep.subr.bf16.mxu0 %v2861
    %3428 = vmatpush1.bf16.msra.mxu0 %v2860
    %3429 = vmatprep.subr.bf16.mxu0 %v2854
    %3430 = vmatpush1.bf16.msra.mxu0 %v2853
    %3431 = vmatprep.subr.bf16.mxu0 %v2847
    %3432 = vmatpush1.bf16.msra.mxu0 %v2846
    %3433 = vmatprep.subr.bf16.mxu0 %v2840
    %3434 = vmatpush1.bf16.msra.mxu0 %v2839
    %3435 = vmatprep.subr.bf16.mxu0 %v2833
    %3436 = vmatpush1.bf16.msra.mxu0 %v2832
    %3437 = vmatprep.subr.bf16.mxu0 %v2826
    %3438 = vmatpush1.bf16.msra.mxu0 %v2825
    %3439 = vmatprep.subr.bf16.mxu0 %v2819
    %3440 = vmatpush1.bf16.msra.mxu0 %v2818
    %3441 = vmatprep.subr.bf16.mxu0 %v2812
    %3442 = vmatpush1.bf16.msra.mxu0 %v2811
    %3443 = vmatprep.subr.bf16.mxu0 %v2917
    %3444 = vmatpush2.bf16.msra.mxu0 %v2916
    %3445 = vmatprep.subr.bf16.mxu0 %v2910
    %3446 = vmatpush2.bf16.msra.mxu0 %v2909
    %3447 = vmatprep.subr.bf16.mxu0 %v2903
    %3448 = vmatpush2.bf16.msra.mxu0 %v2902
    %3449 = vmatprep.subr.bf16.mxu0 %v2896
    %3450 = vmatpush2.bf16.msra.mxu0 %v2895
    %3451 = vmatprep.subr.bf16.mxu0 %v2889
    %3452 = vmatpush2.bf16.msra.mxu0 %v2888
    %3453 = vmatprep.subr.bf16.mxu0 %v2882
    %3454 = vmatpush2.bf16.msra.mxu0 %v2881
    %3455 = vmatprep.subr.bf16.mxu0 %v2875
    %3456 = vmatpush2.bf16.msra.mxu0 %v2874
    %3457 = vmatprep.subr.bf16.mxu0 %v2868
    %3458 = vmatpush2.bf16.msra.mxu0 %v2867
    %3459 = vmatprep.mubr.bf16.mxu0 %v1807
    %3460 = vmatmul.mubr.bf16.gmra.mxu0 %v1806
    %v3461 = vpop.f32.mrf.mxu0
    %v3462 = vadd.f32 %v2087, %v3461
    %v3463 = vpop.f32.mrf.mxu0
    %v3464 = vadd.f32 %v2091, %v3463
    %v3465 = vpop.f32.mrf.mxu0
    %v3466 = vadd.f32 %v2087, %v3465
    %v3467 = vpop.f32.mrf.mxu0
    %v3468 = vadd.f32 %v2091, %v3467
    %3469 = vdwg.mxu0
    %3470 = vmatprep.subr.bf16.mxu0 %v2973
    %3471 = vmatpush1.bf16.msra.mxu0 %v2972
    %3472 = vmatprep.subr.bf16.mxu0 %v2966
    %3473 = vmatpush1.bf16.msra.mxu0 %v2965
    %3474 = vmatprep.subr.bf16.mxu0 %v2959
    %3475 = vmatpush1.bf16.msra.mxu0 %v2958
    %3476 = vmatprep.subr.bf16.mxu0 %v2952
    %3477 = vmatpush1.bf16.msra.mxu0 %v2951
    %3478 = vmatprep.subr.bf16.mxu0 %v2945
    %3479 = vmatpush1.bf16.msra.mxu0 %v2944
    %3480 = vmatprep.subr.bf16.mxu0 %v2938
    %3481 = vmatpush1.bf16.msra.mxu0 %v2937
    %3482 = vmatprep.subr.bf16.mxu0 %v2931
    %3483 = vmatpush1.bf16.msra.mxu0 %v2930
    %3484 = vmatprep.subr.bf16.mxu0 %v2924
    %3485 = vmatpush1.bf16.msra.mxu0 %v2923
    %3486 = vmatprep.subr.bf16.mxu0 %v3029
    %3487 = vmatpush2.bf16.msra.mxu0 %v3028
    %3488 = vmatprep.subr.bf16.mxu0 %v3022
    %3489 = vmatpush2.bf16.msra.mxu0 %v3021
    %3490 = vmatprep.subr.bf16.mxu0 %v3015
    %3491 = vmatpush2.bf16.msra.mxu0 %v3014
    %3492 = vmatprep.subr.bf16.mxu0 %v3008
    %3493 = vmatpush2.bf16.msra.mxu0 %v3007
    %3494 = vmatprep.subr.bf16.mxu0 %v3001
    %3495 = vmatpush2.bf16.msra.mxu0 %v3000
    %3496 = vmatprep.subr.bf16.mxu0 %v2994
    %3497 = vmatpush2.bf16.msra.mxu0 %v2993
    %3498 = vmatprep.subr.bf16.mxu0 %v2987
    %3499 = vmatpush2.bf16.msra.mxu0 %v2986
    %3500 = vmatprep.subr.bf16.mxu0 %v2980
    %3501 = vmatpush2.bf16.msra.mxu0 %v2979
    %3502 = vmatprep.mubr.bf16.mxu0 %v1809
    %3503 = vmatmul.mubr.bf16.gmra.mxu0 %v1808
    %v3504 = vpop.f32.mrf.mxu0
    %v3505 = vadd.f32 %v3462, %v3504
    %v3506 = vpop.f32.mrf.mxu0
    %v3507 = vadd.f32 %v3464, %v3506
    %v3508 = vpop.f32.mrf.mxu0
    %v3509 = vadd.f32 %v3466, %v3508
    %v3510 = vpop.f32.mrf.mxu0
    %v3511 = vadd.f32 %v3468, %v3510
    %3512 = vdwg.mxu0
    %3513 = vmatprep.subr.bf16.mxu0 0
    %3514 = vmatpush1.bf16.msra.mxu0 %v2862
    %3515 = vmatprep.subr.bf16.mxu0 0
    %3516 = vmatpush1.bf16.msra.mxu0 %v2855
    %3517 = vmatprep.subr.bf16.mxu0 0
    %3518 = vmatpush1.bf16.msra.mxu0 %v2848
    %3519 = vmatprep.subr.bf16.mxu0 0
    %3520 = vmatpush1.bf16.msra.mxu0 %v2841
    %3521 = vmatprep.subr.bf16.mxu0 0
    %3522 = vmatpush1.bf16.msra.mxu0 %v2834
    %3523 = vmatprep.subr.bf16.mxu0 0
    %3524 = vmatpush1.bf16.msra.mxu0 %v2827
    %3525 = vmatprep.subr.bf16.mxu0 0
    %3526 = vmatpush1.bf16.msra.mxu0 %v2820
    %3527 = vmatprep.subr.bf16.mxu0 0
    %3528 = vmatpush1.bf16.msra.mxu0 %v2813
    %3529 = vmatprep.subr.bf16.mxu0 0
    %3530 = vmatpush2.bf16.msra.mxu0 %v2918
    %3531 = vmatprep.subr.bf16.mxu0 0
    %3532 = vmatpush2.bf16.msra.mxu0 %v2911
    %3533 = vmatprep.subr.bf16.mxu0 0
    %3534 = vmatpush2.bf16.msra.mxu0 %v2904
    %3535 = vmatprep.subr.bf16.mxu0 0
    %3536 = vmatpush2.bf16.msra.mxu0 %v2897
    %3537 = vmatprep.subr.bf16.mxu0 0
    %3538 = vmatpush2.bf16.msra.mxu0 %v2890
    %3539 = vmatprep.subr.bf16.mxu0 0
    %3540 = vmatpush2.bf16.msra.mxu0 %v2883
    %3541 = vmatprep.subr.bf16.mxu0 0
    %3542 = vmatpush2.bf16.msra.mxu0 %v2876
    %3543 = vmatprep.subr.bf16.mxu0 0
    %3544 = vmatpush2.bf16.msra.mxu0 %v2869
    %3545 = vmatprep.mubr.bf16.mxu0 %v1807
    %3546 = vmatmul.mubr.bf16.gmra.mxu0 %v1806
    %v3547 = vpop.f32.mrf.mxu0
    %v3548 = vadd.f32 %v2095, %v3547
    %v3549 = vpop.f32.mrf.mxu0
    %v3550 = vpop.f32.mrf.mxu0
    %v3551 = vadd.f32 %v2095, %v3550
    %v3552 = vpop.f32.mrf.mxu0
    %3553 = vdwg.mxu0
    %3554 = vmatprep.subr.bf16.mxu0 0
    %3555 = vmatpush1.bf16.msra.mxu0 %v2974
    %3556 = vmatprep.subr.bf16.mxu0 0
    %3557 = vmatpush1.bf16.msra.mxu0 %v2967
    %3558 = vmatprep.subr.bf16.mxu0 0
    %3559 = vmatpush1.bf16.msra.mxu0 %v2960
    %3560 = vmatprep.subr.bf16.mxu0 0
    %3561 = vmatpush1.bf16.msra.mxu0 %v2953
    %3562 = vmatprep.subr.bf16.mxu0 0
    %3563 = vmatpush1.bf16.msra.mxu0 %v2946
    %3564 = vmatprep.subr.bf16.mxu0 0
    %3565 = vmatpush1.bf16.msra.mxu0 %v2939
    %3566 = vmatprep.subr.bf16.mxu0 0
    %3567 = vmatpush1.bf16.msra.mxu0 %v2932
    %3568 = vmatprep.subr.bf16.mxu0 0
    %3569 = vmatpush1.bf16.msra.mxu0 %v2925
    %3570 = vmatprep.subr.bf16.mxu0 0
    %3571 = vmatpush2.bf16.msra.mxu0 %v3030
    %3572 = vmatprep.subr.bf16.mxu0 0
    %3573 = vmatpush2.bf16.msra.mxu0 %v3023
    %3574 = vmatprep.subr.bf16.mxu0 0
    %3575 = vmatpush2.bf16.msra.mxu0 %v3016
    %3576 = vmatprep.subr.bf16.mxu0 0
    %3577 = vmatpush2.bf16.msra.mxu0 %v3009
    %3578 = vmatprep.subr.bf16.mxu0 0
    %3579 = vmatpush2.bf16.msra.mxu0 %v3002
    %3580 = vmatprep.subr.bf16.mxu0 0
    %3581 = vmatpush2.bf16.msra.mxu0 %v2995
    %3582 = vmatprep.subr.bf16.mxu0 0
    %3583 = vmatpush2.bf16.msra.mxu0 %v2988
    %3584 = vmatprep.subr.bf16.mxu0 0
    %3585 = vmatpush2.bf16.msra.mxu0 %v2981
    %3586 = vmatprep.mubr.bf16.mxu0 %v1809
    %3587 = vmatmul.mubr.bf16.gmra.mxu0 %v1808
    %v3588 = vpop.f32.mrf.mxu0
    %v3589 = vadd.f32 %v3548, %v3588
    %v3590 = vpop.f32.mrf.mxu0
    %v3591 = vpop.f32.mrf.mxu0
    %v3592 = vadd.f32 %v3551, %v3591
    %v3593 = vpop.f32.mrf.mxu0
    %3594 = vdwg.mxu0
    %3595 = vst [vmem:[#allocation10] sm:$0xff] %v3333
    %3596 = vst [vmem:[#allocation10 + $0x8] sm:$0xff] %v3335
    %3597 = vst [vmem:[#allocation10 + $0x10] sm:$0xff] %v3419
    %3598 = vst [vmem:[#allocation10 + $0x18] sm:$0xff] %v3421
    %3599 = vst [vmem:[#allocation10 + $0x20] sm:$0xff] %v3505
    %3600 = vst [vmem:[#allocation10 + $0x28] sm:$0xff] %v3507
    %3601 = vst [vmem:[#allocation10 + $0x30] sm:$0xff] %v3589
    %3602 = vst [vmem:[#allocation10 + $0x38] sm:$0xff] %v3337
    %3603 = vst [vmem:[#allocation10 + $0x40] sm:$0xff] %v3339
    %3604 = vst [vmem:[#allocation10 + $0x48] sm:$0xff] %v3423
    %3605 = vst [vmem:[#allocation10 + $0x50] sm:$0xff] %v3425
    %3606 = vst [vmem:[#allocation10 + $0x58] sm:$0xff] %v3509
    %3607 = vst [vmem:[#allocation10 + $0x60] sm:$0xff] %v3511
    %3608 = vst [vmem:[#allocation10 + $0x68] sm:$0xff] %v3592
    // Predicated region
    $region38: #{tpu_custom_call.1} parent=1 // pred_check
      _
    $region39: #{tpu_custom_call.1} parent=1 // pred_check_branch
      %3610 = sbr.rel (0) target = $region41
    $region40: #{tpu_custom_call.1} parent=1 // pred_region
      %s3612 = ssub.s32 1792, 1792
      %3613 = vsyncadd [#allocation4], %s3612
      %s3614 = sshll.u32 [#allocation10], 4
      %s3615 = int_to_ptr.vmem [resolvable:$true] %s3614
      %3620 = dma.vmem_to_hbm [thread:$0]  %s3615, 1792, %s5, [#allocation4], 896, 896, 56
    $region41: #{tpu_custom_call.1} parent=1 // pred_fallthru
      _
    // Predicated region
    $region42: #{tpu_custom_call.1} parent=1 // pred_check
      _
    $region43: #{tpu_custom_call.1} parent=1 // pred_check_branch
      %3622 = sbr.rel (0) target = $region45
    $region44: #{tpu_custom_call.1} parent=1 // pred_region
      %3623 = dma.done [#allocation4], 1792
    $region45: #{tpu_custom_call.1} parent=1 // pred_fallthru
      _
    %3624 = vsyncpa [#allocation3], 1
    %3625 = vsyncpa [#allocation6], 1
    %3626 = vsyncpa [#allocation9], 1
    %3627 = vsyncpa [#allocation4], 1

</llo_original>
